<compile_context>
chip_gen: v5e
topology: v5e:2x2
jax: 0.10.0
libtpu: 0.0.40
codegen_flags: <defaults>
</compile_context>

<pallas_src>
import jax
import jax.numpy as jnp
from jax.experimental import pallas as pl
from jax.experimental.pallas import tpu as pltpu


def _residual_kernel(x_ref, w1_ref, w2_ref, out_ref, xpad_ref):
    # x_ref:    (1, H, W, C)       input block (NHWC) -- the only HBM read of x
    # w1_ref:   (9*C, C_out)       conv3x3 weights in im2col layout, rows = (dy, dx, ci)
    # w2_ref:   (C_out, C_out)     conv1x1 weights, (Cin, Cout)
    # out_ref:  (1, H, W, C_out)
    # xpad_ref: (H+2, W+2, C)      VMEM scratch holding the zero-padded image
    H, W = out_ref.shape[1], out_ref.shape[2]
    C_in = x_ref.shape[3]
    C_out = out_ref.shape[3]

    x = x_ref[0]  # (H, W, C_in)

    # Zero-pad inside the kernel (no HBM round-trip for a padded copy).
    # Full memset every step keeps the border correct even when the "parallel"
    # grid axis is sharded across TensorCores (scratch is per-core, uninitialized).
    xpad_ref[...] = jnp.zeros_like(xpad_ref)
    xpad_ref[1:H + 1, 1:W + 1, :] = x
    xp = xpad_ref[...]  # (H+2, W+2, C_in)

    # im2col: (H*W, 9*C_in).  Column order (dy, dx, ci) matches w1_ref rows.
    cols = []
    for dy in range(3):
        for dx in range(3):
            cols.append(xp[dy:dy + H, dx:dx + W, :].reshape(H * W, C_in))
    patches = jnp.concatenate(cols, axis=1)  # (H*W, 9*C_in)

    # 3x3 conv as a single fused K = 9*C matmul, f32 accumulation on the MXU.
    h = jnp.dot(patches, w1_ref[...], preferred_element_type=jnp.float32)  # (H*W, C_out)
    h = jnp.maximum(h, 0.0)  # ReLU

    # 1x1 conv == plain channel matmul.
    y = jnp.dot(h, w2_ref[...], preferred_element_type=jnp.float32)        # (H*W, C_out)

    # Residual add, reusing the x tile already in VMEM.
    out = x.reshape(H * W, C_in).astype(jnp.float32) + y
    out_ref[0] = out.reshape(H, W, C_out).astype(out_ref.dtype)


def residual_layer_pallas(x_nchw, w1_hwio, w2_io):
    """x_nchw: (N, C, H, W) f32.  w1_hwio: (3,3,Cin,Cout).  w2_io: (Cout,Cout)."""
    N, C, H, W = x_nchw.shape
    C_out = w1_hwio.shape[-1]
    assert C == C_out, "residual add requires in_channels == out_channels"

    # Layout plumbing only: NCHW -> NHWC (channels on the lane axis), and
    # reshape conv3x3 weights to the im2col GEMM matrix (free, weight-sized).
    x = jnp.transpose(x_nchw, (0, 2, 3, 1))            # (N, H, W, C)
    w1_mat = w1_hwio.reshape(9 * C, C_out)             # rows ordered (dy, dx, ci)

    out_nhwc = pl.pallas_call(
        _residual_kernel,
        out_shape=jax.ShapeDtypeStruct((N, H, W, C_out), x.dtype),
        grid_spec=pltpu.PrefetchScalarGridSpec(
            num_scalar_prefetch=0,
            grid=(N,),
            in_specs=[
                pl.BlockSpec((1, H, W, C), lambda n: (n, 0, 0, 0)),
                pl.BlockSpec((9 * C, C_out), lambda n: (0, 0)),
                pl.BlockSpec((C_out, C_out), lambda n: (0, 0)),
            ],
            out_specs=pl.BlockSpec((1, H, W, C_out), lambda n: (n, 0, 0, 0)),
            scratch_shapes=[pltpu.VMEM((H + 2, W + 2, C), x.dtype)],
        ),
        compiler_params=pltpu.CompilerParams(
            dimension_semantics=("parallel",),
            vmem_limit_bytes=32 * 1024 * 1024,
        ),
    )(x, w1_mat, w2_io)

    return jnp.transpose(out_nhwc, (0, 3, 1, 2))  # back to NCHW


def residual_layer_ref(x_nchw, w1_hwio, w2_io):
    """Pure-JAX reference (NCHW in/out), mirrors the PyTorch module."""
    w1_oihw = jnp.transpose(w1_hwio, (3, 2, 0, 1))  # (O, I, 3, 3)
    h = jax.lax.conv_general_dilated(
        x_nchw, w1_oihw, window_strides=(1, 1), padding=((1, 1), (1, 1)),
        dimension_numbers=("NCHW", "OIHW", "NCHW"))
    h = jnp.maximum(h, 0.0)
    w2_oihw = jnp.transpose(w2_io, (1, 0))[:, :, None, None]     # (O, I, 1, 1)
    y = jax.lax.conv_general_dilated(
        h, w2_oihw, window_strides=(1, 1), padding=((0, 0), (0, 0)),
        dimension_numbers=("NCHW", "OIHW", "NCHW"))
    return x_nchw + y


if __name__ == "__main__":
    # Small shapes consistent with the module: batch=2, channels=4, spatial=16.
    N, C, H, W = 2, 4, 16, 16
    key = jax.random.PRNGKey(0)
    kx, k1, k2 = jax.random.split(key, 3)

    x = jax.random.normal(kx, (N, C, H, W), dtype=jnp.float32)
    # Deterministic synthetic weights (kaiming-ish scale), no bias per the module.
    w1 = jax.random.normal(k1, (3, 3, C, C), dtype=jnp.float32) * (1.0 / (3 * 3 * C)) ** 0.5
    w2 = jax.random.normal(k2, (C, C), dtype=jnp.float32) * (1.0 / C) ** 0.5

    out = residual_layer_pallas(x, w1, w2)
    out = jax.block_until_ready(out)

    ref = residual_layer_ref(x, w1, w2)
    assert out.shape == (N, C, H, W)
    assert jnp.allclose(out, ref, atol=1e-4, rtol=1e-4), "mismatch vs reference"

    print("KERNEL_OK")
</pallas_src>

<mosaic_0001>
module attributes {stable_mosaic.version = 11 : i64} {
  func.func @_residual_kernel(%arg0: i32, %arg1: memref<1x16x16x4xf32, #tpu.memory_space<vmem>>, %arg2: memref<36x4xf32, #tpu.memory_space<vmem>>, %arg3: memref<4x4xf32, #tpu.memory_space<vmem>>, %arg4: memref<1x16x16x4xf32, #tpu.memory_space<vmem>>, %arg5: memref<18x18x4xf32, #tpu.memory_space<vmem>>) attributes {dimension_semantics = [#tpu.dimension_semantics<parallel>], iteration_bounds = array<i64: 2>, scalar_prefetch = 0 : i64, scratch_operands = 1 : i64, tpu.core_type = #tpu.core_type<tc>, window_params = [{transform_indices = @transform_0, window_bounds = array<i64: 1, 16, 16, 4>}, {pipeline_mode = #tpu.pipeline_mode<synchronous>, transform_indices = @transform_1, window_bounds = array<i64: 36, 4>}, {pipeline_mode = #tpu.pipeline_mode<synchronous>, transform_indices = @transform_2, window_bounds = array<i64: 4, 4>}, {transform_indices = @transform_3, window_bounds = array<i64: 1, 16, 16, 4>}]} {
    %c0 = arith.constant 0 : index
    %c0_0 = arith.constant 0 : index
    %c0_1 = arith.constant 0 : index
    %c0_2 = arith.constant 0 : index
    %0 = vector.load %arg1[%c0, %c0_0, %c0_1, %c0_2] : memref<1x16x16x4xf32, #tpu.memory_space<vmem>>, vector<1x16x16x4xf32>
    %1 = vector.shape_cast %0 : vector<1x16x16x4xf32> to vector<16x16x4xf32>
    %cst = arith.constant 0.000000e+00 : f32
    %2 = vector.broadcast %cst : f32 to vector<18x18x4xf32>
    %c0_3 = arith.constant 0 : index
    %c0_4 = arith.constant 0 : index
    %c0_5 = arith.constant 0 : index
    %3 = vector.load %arg5[%c0_3, %c0_4, %c0_5] : memref<18x18x4xf32, #tpu.memory_space<vmem>>, vector<18x18x4xf32>
    tpu.vector_store %arg5[%c0_3, %c0_4, %c0_5], %2 {strides = array<i32>} : memref<18x18x4xf32, #tpu.memory_space<vmem>>, vector<18x18x4xf32>,
    %c1 = arith.constant 1 : index
    %c1_6 = arith.constant 1 : index
    %c0_7 = arith.constant 0 : index
    %4 = vector.load %arg5[%c1, %c1_6, %c0_7] : memref<18x18x4xf32, #tpu.memory_space<vmem>>, vector<16x16x4xf32>
    tpu.vector_store %arg5[%c1, %c1_6, %c0_7], %1 {strides = array<i32>} : memref<18x18x4xf32, #tpu.memory_space<vmem>>, vector<16x16x4xf32>,
    %c0_8 = arith.constant 0 : index
    %c0_9 = arith.constant 0 : index
    %c0_10 = arith.constant 0 : index
    %5 = vector.load %arg5[%c0_8, %c0_9, %c0_10] : memref<18x18x4xf32, #tpu.memory_space<vmem>>, vector<18x18x4xf32>
    %6 = vector.extract_strided_slice %5 {offsets = [0, 0, 0], sizes = [16, 16, 4], strides = [1, 1, 1]} : vector<18x18x4xf32> to vector<16x16x4xf32>
    %7 = vector.shape_cast %6 : vector<16x16x4xf32> to vector<256x4xf32>
    %8 = vector.extract_strided_slice %5 {offsets = [0, 1, 0], sizes = [16, 16, 4], strides = [1, 1, 1]} : vector<18x18x4xf32> to vector<16x16x4xf32>
    %9 = vector.shape_cast %8 : vector<16x16x4xf32> to vector<256x4xf32>
    %10 = vector.extract_strided_slice %5 {offsets = [0, 2, 0], sizes = [16, 16, 4], strides = [1, 1, 1]} : vector<18x18x4xf32> to vector<16x16x4xf32>
    %11 = vector.shape_cast %10 : vector<16x16x4xf32> to vector<256x4xf32>
    %12 = vector.extract_strided_slice %5 {offsets = [1, 0, 0], sizes = [16, 16, 4], strides = [1, 1, 1]} : vector<18x18x4xf32> to vector<16x16x4xf32>
    %13 = vector.shape_cast %12 : vector<16x16x4xf32> to vector<256x4xf32>
    %14 = vector.extract_strided_slice %5 {offsets = [1, 1, 0], sizes = [16, 16, 4], strides = [1, 1, 1]} : vector<18x18x4xf32> to vector<16x16x4xf32>
    %15 = vector.shape_cast %14 : vector<16x16x4xf32> to vector<256x4xf32>
    %16 = vector.extract_strided_slice %5 {offsets = [1, 2, 0], sizes = [16, 16, 4], strides = [1, 1, 1]} : vector<18x18x4xf32> to vector<16x16x4xf32>
    %17 = vector.shape_cast %16 : vector<16x16x4xf32> to vector<256x4xf32>
    %18 = vector.extract_strided_slice %5 {offsets = [2, 0, 0], sizes = [16, 16, 4], strides = [1, 1, 1]} : vector<18x18x4xf32> to vector<16x16x4xf32>
    %19 = vector.shape_cast %18 : vector<16x16x4xf32> to vector<256x4xf32>
    %20 = vector.extract_strided_slice %5 {offsets = [2, 1, 0], sizes = [16, 16, 4], strides = [1, 1, 1]} : vector<18x18x4xf32> to vector<16x16x4xf32>
    %21 = vector.shape_cast %20 : vector<16x16x4xf32> to vector<256x4xf32>
    %22 = vector.extract_strided_slice %5 {offsets = [2, 2, 0], sizes = [16, 16, 4], strides = [1, 1, 1]} : vector<18x18x4xf32> to vector<16x16x4xf32>
    %23 = vector.shape_cast %22 : vector<16x16x4xf32> to vector<256x4xf32>
    %24 = tpu.concatenate %7, %9, %11, %13, %15, %17, %19, %21, %23 in 1 : vector<256x4xf32>, vector<256x4xf32>, vector<256x4xf32>, vector<256x4xf32>, vector<256x4xf32>, vector<256x4xf32>, vector<256x4xf32>, vector<256x4xf32>, vector<256x4xf32> -> vector<256x36xf32>
    %c0_11 = arith.constant 0 : index
    %c0_12 = arith.constant 0 : index
    %25 = vector.load %arg2[%c0_11, %c0_12] : memref<36x4xf32, #tpu.memory_space<vmem>>, vector<36x4xf32>
    %cst_13 = arith.constant dense<0.000000e+00> : vector<256x4xf32>
    %26 = tpu.matmul %24, %25, %cst_13 {dimension_numbers = #tpu.dot_dimension_numbers<[1], [0], [0], [1], [0, 0, 1, 1], [], []>} : vector<256x36xf32>, vector<36x4xf32>, vector<256x4xf32> -> vector<256x4xf32>
    %cst_14 = arith.constant 0.000000e+00 : f32
    %27 = vector.broadcast %cst_14 : f32 to vector<256x4xf32>
    %28 = arith.maximumf %26, %27 : vector<256x4xf32>
    %c0_15 = arith.constant 0 : index
    %c0_16 = arith.constant 0 : index
    %29 = vector.load %arg3[%c0_15, %c0_16] : memref<4x4xf32, #tpu.memory_space<vmem>>, vector<4x4xf32>
    %cst_17 = arith.constant dense<0.000000e+00> : vector<256x4xf32>
    %30 = tpu.matmul %28, %29, %cst_17 {dimension_numbers = #tpu.dot_dimension_numbers<[1], [0], [0], [1], [0, 0, 1, 1], [], []>} : vector<256x4xf32>, vector<4x4xf32>, vector<256x4xf32> -> vector<256x4xf32>
    %31 = vector.shape_cast %1 : vector<16x16x4xf32> to vector<256x4xf32>
    %32 = arith.addf %31, %30 : vector<256x4xf32>
    %33 = vector.shape_cast %32 : vector<256x4xf32> to vector<16x16x4xf32>
    %c0_18 = arith.constant 0 : index
    %c0_19 = arith.constant 0 : index
    %c0_20 = arith.constant 0 : index
    %c0_21 = arith.constant 0 : index
    %34 = vector.load %arg4[%c0_18, %c0_19, %c0_20, %c0_21] : memref<1x16x16x4xf32, #tpu.memory_space<vmem>>, vector<1x16x16x4xf32>
    %35 = vector.shape_cast %34 : vector<1x16x16x4xf32> to vector<16x16x4xf32>
    %36 = vector.shape_cast %33 : vector<16x16x4xf32> to vector<1x16x16x4xf32>
    tpu.vector_store %arg4[%c0_18, %c0_19, %c0_20, %c0_21], %36 {strides = array<i32>} : memref<1x16x16x4xf32, #tpu.memory_space<vmem>>, vector<1x16x16x4xf32>,
    return
  }
  func.func @transform_0(%arg0: i32) -> (i32, i32, i32, i32) {
    %c0_i32 = arith.constant 0 : i32
    %c0_i32_0 = arith.constant 0 : i32
    %c0_i32_1 = arith.constant 0 : i32
    %c0_i32_2 = arith.constant 0 : i32
    return %arg0, %c0_i32, %c0_i32_0, %c0_i32_1 : i32, i32, i32, i32
  }
  func.func @transform_1(%arg0: i32) -> (i32, i32) {
    %c0_i32 = arith.constant 0 : i32
    %c0_i32_0 = arith.constant 0 : i32
    %c0_i32_1 = arith.constant 0 : i32
    return %c0_i32, %c0_i32_0 : i32, i32
  }
  func.func @transform_2(%arg0: i32) -> (i32, i32) {
    %c0_i32 = arith.constant 0 : i32
    %c0_i32_0 = arith.constant 0 : i32
    %c0_i32_1 = arith.constant 0 : i32
    return %c0_i32, %c0_i32_0 : i32, i32
  }
  func.func @transform_3(%arg0: i32) -> (i32, i32, i32, i32) {
    %c0_i32 = arith.constant 0 : i32
    %c0_i32_0 = arith.constant 0 : i32
    %c0_i32_1 = arith.constant 0 : i32
    %c0_i32_2 = arith.constant 0 : i32
    return %arg0, %c0_i32, %c0_i32_0, %c0_i32_1 : i32, i32, i32, i32
  }
}

</mosaic_0001>

<llo_original>
// kernel: tpu_custom_call.1
$region0: #{tpu_custom_call.1}
  #allocation0 [shape = 'u32[]', space=smem, size = 0x4, offset = 0x4, fixed_abs, tag = 'smem constant byte address 0x4 - core index']
  #allocation1 [shape = 'u32[72,128]{1,0:T(1,128)}', space=vmem, size = 0x9000, scoped, tag = 'internal scratch']
  #allocation2 [shape = 'f32[18,18,4]{2,1,0:T(8,128)}', space=vmem, size = 0x36000, scoped, tag = 'scratch operand']
  %s0 = inlined_call_operand.vmem [shape: f32[2,16,16,4], index: 0, kind: input, shape index: {}]
  %s1 = inlined_call_operand.vmem [shape: f32[36,4], index: 1, kind: input, shape index: {}]
  %s2 = inlined_call_operand.vmem [shape: f32[4,4], index: 2, kind: input, shape index: {}]
  %s3 = inlined_call_operand.vmem [shape: f32[2,16,16,4], index: 3, kind: output, shape index: {}]
  %s4 = sld [smem:[#allocation0]]
  $region45: #{tpu_custom_call.1} parent=0
    _
  %s6 = ssub.s32 1, %s4
  %s7 = scalar_select 0, %s6, %s4
  loop: start=0, step=1, limit=4
  $region2: #{tpu_custom_call.1} parent=0 // loop_pre_header
    _
  $region3: #{tpu_custom_call.1} parent=0 // loop_header
    %s9 = sphi 0, %s13
    %p10 = scmp.ge.s32.totalorder %s9, 4
    %s19 = sphi 0, %s21
    %s22 = sphi 0, %s19
    %s23 = sphi 0, %s22
    %s39 = sphi 0, %s23
    %s43 = sphi 0, %s43
    %s45 = sphi 0, %s43
    %s46 = sphi 0, %s45
    %s60 = sphi 0, %s46
    %s64 = sphi 0, %s64
    %s66 = sphi 0, %s64
    %s67 = sphi 0, %s66
    %s81 = sphi 0, %s67
    %s87 = sphi 0, %s89
    %s90 = sphi 0, %s87
    %s91 = sphi 0, %s90
    %s107 = sphi 0, %s91
  $region4: #{tpu_custom_call.1} parent=0 // loop_header_branch
    %12 = sbr.rel (%p10) target = $region8
  $region5: #{tpu_custom_call.1} parent=0 // loop_body
    %s14 = ssub.s32 %s9, 1
    %s15 = ssub.s32 %s9, 2
    %s16 = sadd.s32 %s9, 1
    %s17 = ssub.s32 %s9, %s16
    %p18 = scmp.eq.s32.totalorder %s17, 0
    %s20 = sadd.s32 %s19, 1
    %s21 = scalar_select %p18, %s19, %s20
    %p24 = pneg %p18
    %p25 = scmp.eq.s32.totalorder %s9, 1
    %p26 = por %p24, %p25
    %p27 = scmp.ne.s32.totalorder %s19, %s22
    %p28 = scmp.eq.s32.totalorder %s9, 0
    %p29 = por %p27, %p28
    %p30 = scmp.ne.s32.totalorder %s19, %s22
    %p31 = scmp.eq.s32.totalorder %s14, 1
    %p32 = por %p30, %p31
    %p33 = scmp.ne.s32.totalorder %s22, %s23
    %p34 = scmp.eq.s32.totalorder %s14, 0
    %p35 = por %p33, %p34
    %p36 = scmp.ne.s32.totalorder %s22, %s23
    %p37 = scmp.eq.s32.totalorder %s15, 1
    %p38 = por %p36, %p37
    %p40 = scmp.ne.s32.totalorder %s23, %s39
    %p41 = scmp.eq.s32.totalorder %s15, 0
    %p42 = por %p40, %p41
    %s44 = sadd.s32 %s43, 1
    %p47 = scmp.eq.s32.totalorder %s9, 1
    %p48 = scmp.ne.s32.totalorder %s43, %s45
    %p49 = scmp.eq.s32.totalorder %s9, 0
    %p50 = por %p48, %p49
    %p51 = scmp.ne.s32.totalorder %s43, %s45
    %p52 = scmp.eq.s32.totalorder %s14, 1
    %p53 = por %p51, %p52
    %p54 = scmp.ne.s32.totalorder %s45, %s46
    %p55 = scmp.eq.s32.totalorder %s14, 0
    %p56 = por %p54, %p55
    %p57 = scmp.ne.s32.totalorder %s45, %s46
    %p58 = scmp.eq.s32.totalorder %s15, 1
    %p59 = por %p57, %p58
    %p61 = scmp.ne.s32.totalorder %s46, %s60
    %p62 = scmp.eq.s32.totalorder %s15, 0
    %p63 = por %p61, %p62
    %s65 = sadd.s32 %s64, 1
    %p68 = scmp.eq.s32.totalorder %s9, 1
    %p69 = scmp.ne.s32.totalorder %s64, %s66
    %p70 = scmp.eq.s32.totalorder %s9, 0
    %p71 = por %p69, %p70
    %p72 = scmp.ne.s32.totalorder %s64, %s66
    %p73 = scmp.eq.s32.totalorder %s14, 1
    %p74 = por %p72, %p73
    %p75 = scmp.ne.s32.totalorder %s66, %s67
    %p76 = scmp.eq.s32.totalorder %s14, 0
    %p77 = por %p75, %p76
    %p78 = scmp.ne.s32.totalorder %s66, %s67
    %p79 = scmp.eq.s32.totalorder %s15, 1
    %p80 = por %p78, %p79
    %p82 = scmp.ne.s32.totalorder %s67, %s81
    %p83 = scmp.eq.s32.totalorder %s15, 0
    %p84 = por %p82, %p83
    %s85 = ssub.s32 %s9, %s16
    %p86 = scmp.eq.s32.totalorder %s85, 0
    %s88 = sadd.s32 %s87, 1
    %s89 = scalar_select %p86, %s87, %s88
    %p92 = pneg %p86
    %p93 = scmp.eq.s32.totalorder %s9, 1
    %p94 = por %p92, %p93
    %p95 = scmp.ne.s32.totalorder %s87, %s90
    %p96 = scmp.eq.s32.totalorder %s9, 0
    %p97 = por %p95, %p96
    %p98 = scmp.ne.s32.totalorder %s87, %s90
    %p99 = scmp.eq.s32.totalorder %s14, 1
    %p100 = por %p98, %p99
    %p101 = scmp.ne.s32.totalorder %s90, %s91
    %p102 = scmp.eq.s32.totalorder %s14, 0
    %p103 = por %p101, %p102
    %p104 = scmp.ne.s32.totalorder %s90, %s91
    %p105 = scmp.eq.s32.totalorder %s15, 1
    %p106 = por %p104, %p105
    %p108 = scmp.ne.s32.totalorder %s91, %s107
    %p109 = scmp.eq.s32.totalorder %s15, 0
    %p110 = por %p108, %p109
    %p111 = scmp.le.s32.totalorder 1, %s9
    %p112 = scmp.lt.s32.totalorder %s9, 3
    %p113 = pnand %p111, %p112
    %p114 = pneg %p113
    // Predicated region
    $region9: #{tpu_custom_call.1} parent=5 // pred_check
      _
    $region10: #{tpu_custom_call.1} parent=5 // pred_check_branch
      %116 = sbr.rel (%p113) target = $region12
    $region11: #{tpu_custom_call.1} parent=5 // pred_region
      %s117 = ssub.s32 %s9, 1
      // Predicated region
      $region13: #{tpu_custom_call.1} parent=11 // pred_check
        %p118 = pneg %p56
      $region14: #{tpu_custom_call.1} parent=11 // pred_check_branch
        %120 = sbr.rel (%p118) target = $region16
      $region15: #{tpu_custom_call.1} parent=11 // pred_region
        _
      $region16: #{tpu_custom_call.1} parent=11 // pred_fallthru
        _
      // Predicated region
      $region17: #{tpu_custom_call.1} parent=11 // pred_check
        %p121 = pneg %p77
      $region18: #{tpu_custom_call.1} parent=11 // pred_check_branch
        %123 = sbr.rel (%p121) target = $region20
      $region19: #{tpu_custom_call.1} parent=11 // pred_region
        _
      $region20: #{tpu_custom_call.1} parent=11 // pred_fallthru
        _
    $region12: #{tpu_custom_call.1} parent=5 // pred_fallthru
      _
    %p124 = scmp.lt.s32.totalorder %s9, 2
    // Predicated region
    $region21: #{tpu_custom_call.1} parent=5 // pred_check
      %p125 = pneg %p124
    $region22: #{tpu_custom_call.1} parent=5 // pred_check_branch
      %127 = sbr.rel (%p125) target = $region24
    $region23: #{tpu_custom_call.1} parent=5 // pred_region
      // Predicated region
      $region25: #{tpu_custom_call.1} parent=23 // pred_check
        %p128 = pneg %p29
      $region26: #{tpu_custom_call.1} parent=23 // pred_check_branch
        %130 = sbr.rel (%p128) target = $region28
      $region27: #{tpu_custom_call.1} parent=23 // pred_region
        %p131 = scmp.lt.s32.totalorder %s9, 1
        %s132 = scalar_select %p131, %s9, 1
        %s133 = smul.addr %s132, 32
        %s134 = smul.addr %s133, 8
        %s135 = scalar_lea.vmem %s0, %s134
      $region28: #{tpu_custom_call.1} parent=23 // pred_fallthru
        _
    $region24: #{tpu_custom_call.1} parent=5 // pred_fallthru
      _
    %p136 = scmp.le.s32.totalorder 1, %s9
    %p137 = scmp.lt.s32.totalorder %s9, 3
    %p138 = pnand %p136, %p137
    %p139 = pneg %p138
    // Predicated region
    $region29: #{tpu_custom_call.1} parent=5 // pred_check
      _
    $region30: #{tpu_custom_call.1} parent=5 // pred_check_branch
      %141 = sbr.rel (%p138) target = $region32
    $region31: #{tpu_custom_call.1} parent=5 // pred_region
      %s142 = ssub.s32 %s9, 1
      %p143 = scmp.lt.s32.totalorder %s14, 1
      %s144 = scalar_select %p143, %s14, 1
      %s145 = smul.addr %s144, 32
      %s146 = smul.addr %s145, 8
      %s147 = scalar_lea.vmem %s0, %s146
      %p148 = pneg %p35
      %p149 = pneg %p32
      %p150 = pneg %p56
      %p151 = pneg %p53
      %p152 = pneg %p77
      %p153 = pneg %p74
      %p154 = pneg %p103
      %p155 = pneg %p100
      %p156 = scmp.lt.s32.totalorder %s14, 1
      %s157 = scalar_select %p156, %s14, 1
      %s158 = smul.addr %s157, 32
      %s159 = smul.addr %s158, 8
      %s160 = scalar_lea.vmem %s3, %s159
      %p161 = scmp.lt.s32.totalorder %s14, 1
      %s162 = scalar_select %p161, %s14, 1
      %s163 = smul.addr %s162, 32
      %s164 = smul.addr %s163, 8
      %s165 = scalar_lea.vmem %s0, %s164
      %p166 = scmp.lt.s32.totalorder %s14, 1
      %s167 = scalar_select %p166, %s14, 1
      %s168 = smul.addr %s167, 32
      %s169 = smul.addr %s168, 8
      %s170 = scalar_lea.vmem %s3, %s169
      %v171 = vld [vmem:[%s165] sm:$0xff]
      %v172 = vld [vmem:[%s165 + $0x8] sm:$0xff]
      %v173 = vld [vmem:[%s165 + $0x10] sm:$0xff]
      %v174 = vld [vmem:[%s165 + $0x18] sm:$0xff]
      %v175 = vld [vmem:[%s165 + $0x20] sm:$0xff]
      %v176 = vld [vmem:[%s165 + $0x28] sm:$0xff]
      %v177 = vld [vmem:[%s165 + $0x30] sm:$0xff]
      %v178 = vld [vmem:[%s165 + $0x38] sm:$0xff]
      %v179 = vld [vmem:[%s165 + $0x40] sm:$0xff]
      %v180 = vld [vmem:[%s165 + $0x48] sm:$0xff]
      %v181 = vld [vmem:[%s165 + $0x50] sm:$0xff]
      %v182 = vld [vmem:[%s165 + $0x58] sm:$0xff]
      %v183 = vld [vmem:[%s165 + $0x60] sm:$0xff]
      %v184 = vld [vmem:[%s165 + $0x68] sm:$0xff]
      %v185 = vld [vmem:[%s165 + $0x70] sm:$0xff]
      %v186 = vld [vmem:[%s165 + $0x78] sm:$0xff]
      %v187 = vld [vmem:[%s165 + $0x80] sm:$0xff]
      %v188 = vld [vmem:[%s165 + $0x88] sm:$0xff]
      %v189 = vld [vmem:[%s165 + $0x90] sm:$0xff]
      %v190 = vld [vmem:[%s165 + $0x98] sm:$0xff]
      %v191 = vld [vmem:[%s165 + $0xa0] sm:$0xff]
      %v192 = vld [vmem:[%s165 + $0xa8] sm:$0xff]
      %v193 = vld [vmem:[%s165 + $0xb0] sm:$0xff]
      %v194 = vld [vmem:[%s165 + $0xb8] sm:$0xff]
      %v195 = vld [vmem:[%s165 + $0xc0] sm:$0xff]
      %v196 = vld [vmem:[%s165 + $0xc8] sm:$0xff]
      %v197 = vld [vmem:[%s165 + $0xd0] sm:$0xff]
      %v198 = vld [vmem:[%s165 + $0xd8] sm:$0xff]
      %v199 = vld [vmem:[%s165 + $0xe0] sm:$0xff]
      %v200 = vld [vmem:[%s165 + $0xe8] sm:$0xff]
      %v201 = vld [vmem:[%s165 + $0xf0] sm:$0xff]
      %v202 = vld [vmem:[%s165 + $0xf8] sm:$0xff]
      %vm203 = vcmask 31744
      %204 = vst.msk [vmem:[#allocation2] sm:$0xff] %vm203, 0.0
      %205 = vst.msk [vmem:[#allocation2 + $0x8] sm:$0xff] %vm203, 0.0
      %vm206 = vcmask 25600
      %207 = vst.msk [vmem:[#allocation2 + $0x10] sm:$0x3] %vm206, 0.0
      %208 = vst.msk [vmem:[#allocation2 + $0x18] sm:$0xff] %vm203, 0.0
      %209 = vst.msk [vmem:[#allocation2 + $0x20] sm:$0xff] %vm203, 0.0
      %210 = vst.msk [vmem:[#allocation2 + $0x28] sm:$0x3] %vm206, 0.0
      %211 = vst.msk [vmem:[#allocation2 + $0x30] sm:$0xff] %vm203, 0.0
      %212 = vst.msk [vmem:[#allocation2 + $0x38] sm:$0xff] %vm203, 0.0
      %213 = vst.msk [vmem:[#allocation2 + $0x40] sm:$0x3] %vm206, 0.0
      %214 = vst.msk [vmem:[#allocation2 + $0x48] sm:$0xff] %vm203, 0.0
      %215 = vst.msk [vmem:[#allocation2 + $0x50] sm:$0xff] %vm203, 0.0
      %216 = vst.msk [vmem:[#allocation2 + $0x58] sm:$0x3] %vm206, 0.0
      %217 = vst.msk [vmem:[#allocation2 + $0x60] sm:$0xff] %vm203, 0.0
      %218 = vst.msk [vmem:[#allocation2 + $0x68] sm:$0xff] %vm203, 0.0
      %219 = vst.msk [vmem:[#allocation2 + $0x70] sm:$0x3] %vm206, 0.0
      %220 = vst.msk [vmem:[#allocation2 + $0x78] sm:$0xff] %vm203, 0.0
      %221 = vst.msk [vmem:[#allocation2 + $0x80] sm:$0xff] %vm203, 0.0
      %222 = vst.msk [vmem:[#allocation2 + $0x88] sm:$0x3] %vm206, 0.0
      %223 = vst.msk [vmem:[#allocation2 + $0x90] sm:$0xff] %vm203, 0.0
      %224 = vst.msk [vmem:[#allocation2 + $0x98] sm:$0xff] %vm203, 0.0
      %225 = vst.msk [vmem:[#allocation2 + $0xa0] sm:$0x3] %vm206, 0.0
      %226 = vst.msk [vmem:[#allocation2 + $0xa8] sm:$0xff] %vm203, 0.0
      %227 = vst.msk [vmem:[#allocation2 + $0xb0] sm:$0xff] %vm203, 0.0
      %228 = vst.msk [vmem:[#allocation2 + $0xb8] sm:$0x3] %vm206, 0.0
      %229 = vst.msk [vmem:[#allocation2 + $0xc0] sm:$0xff] %vm203, 0.0
      %230 = vst.msk [vmem:[#allocation2 + $0xc8] sm:$0xff] %vm203, 0.0
      %231 = vst.msk [vmem:[#allocation2 + $0xd0] sm:$0x3] %vm206, 0.0
      %232 = vst.msk [vmem:[#allocation2 + $0xd8] sm:$0xff] %vm203, 0.0
      %233 = vst.msk [vmem:[#allocation2 + $0xe0] sm:$0xff] %vm203, 0.0
      %234 = vst.msk [vmem:[#allocation2 + $0xe8] sm:$0x3] %vm206, 0.0
      %235 = vst.msk [vmem:[#allocation2 + $0xf0] sm:$0xff] %vm203, 0.0
      %236 = vst.msk [vmem:[#allocation2 + $0xf8] sm:$0xff] %vm203, 0.0
      %237 = vst.msk [vmem:[#allocation2 + $0x100] sm:$0x3] %vm206, 0.0
      %238 = vst.msk [vmem:[#allocation2 + $0x108] sm:$0xff] %vm203, 0.0
      %239 = vst.msk [vmem:[#allocation2 + $0x110] sm:$0xff] %vm203, 0.0
      %240 = vst.msk [vmem:[#allocation2 + $0x118] sm:$0x3] %vm206, 0.0
      %241 = vst.msk [vmem:[#allocation2 + $0x120] sm:$0xff] %vm203, 0.0
      %242 = vst.msk [vmem:[#allocation2 + $0x128] sm:$0xff] %vm203, 0.0
      %243 = vst.msk [vmem:[#allocation2 + $0x130] sm:$0x3] %vm206, 0.0
      %244 = vst.msk [vmem:[#allocation2 + $0x138] sm:$0xff] %vm203, 0.0
      %245 = vst.msk [vmem:[#allocation2 + $0x140] sm:$0xff] %vm203, 0.0
      %246 = vst.msk [vmem:[#allocation2 + $0x148] sm:$0x3] %vm206, 0.0
      %247 = vst.msk [vmem:[#allocation2 + $0x150] sm:$0xff] %vm203, 0.0
      %248 = vst.msk [vmem:[#allocation2 + $0x158] sm:$0xff] %vm203, 0.0
      %249 = vst.msk [vmem:[#allocation2 + $0x160] sm:$0x3] %vm206, 0.0
      %250 = vst.msk [vmem:[#allocation2 + $0x168] sm:$0xff] %vm203, 0.0
      %251 = vst.msk [vmem:[#allocation2 + $0x170] sm:$0xff] %vm203, 0.0
      %252 = vst.msk [vmem:[#allocation2 + $0x178] sm:$0x3] %vm206, 0.0
      %253 = vst.msk [vmem:[#allocation2 + $0x180] sm:$0xff] %vm203, 0.0
      %254 = vst.msk [vmem:[#allocation2 + $0x188] sm:$0xff] %vm203, 0.0
      %255 = vst.msk [vmem:[#allocation2 + $0x190] sm:$0x3] %vm206, 0.0
      %256 = vst.msk [vmem:[#allocation2 + $0x198] sm:$0xff] %vm203, 0.0
      %257 = vst.msk [vmem:[#allocation2 + $0x1a0] sm:$0xff] %vm203, 0.0
      %258 = vst.msk [vmem:[#allocation2 + $0x1a8] sm:$0x3] %vm206, 0.0
      %s259 = scalar_lea.vmem [#allocation2], 24
      %260 = vst.msk [vmem:[%s259 + $0x1] sm:$0xff] %vm203, %v171
      %261 = vst.msk [vmem:[%s259 + $0x9] sm:$0xff] %vm203, %v172
      %262 = vst.msk [vmem:[%s259 + $0x19] sm:$0xff] %vm203, %v173
      %263 = vst.msk [vmem:[%s259 + $0x21] sm:$0xff] %vm203, %v174
      %264 = vst.msk [vmem:[%s259 + $0x31] sm:$0xff] %vm203, %v175
      %265 = vst.msk [vmem:[%s259 + $0x39] sm:$0xff] %vm203, %v176
      %266 = vst.msk [vmem:[%s259 + $0x49] sm:$0xff] %vm203, %v177
      %267 = vst.msk [vmem:[%s259 + $0x51] sm:$0xff] %vm203, %v178
      %268 = vst.msk [vmem:[%s259 + $0x61] sm:$0xff] %vm203, %v179
      %269 = vst.msk [vmem:[%s259 + $0x69] sm:$0xff] %vm203, %v180
      %270 = vst.msk [vmem:[%s259 + $0x79] sm:$0xff] %vm203, %v181
      %271 = vst.msk [vmem:[%s259 + $0x81] sm:$0xff] %vm203, %v182
      %272 = vst.msk [vmem:[%s259 + $0x91] sm:$0xff] %vm203, %v183
      %273 = vst.msk [vmem:[%s259 + $0x99] sm:$0xff] %vm203, %v184
      %274 = vst.msk [vmem:[%s259 + $0xa9] sm:$0xff] %vm203, %v185
      %275 = vst.msk [vmem:[%s259 + $0xb1] sm:$0xff] %vm203, %v186
      %276 = vst.msk [vmem:[%s259 + $0xc1] sm:$0xff] %vm203, %v187
      %277 = vst.msk [vmem:[%s259 + $0xc9] sm:$0xff] %vm203, %v188
      %278 = vst.msk [vmem:[%s259 + $0xd9] sm:$0xff] %vm203, %v189
      %279 = vst.msk [vmem:[%s259 + $0xe1] sm:$0xff] %vm203, %v190
      %280 = vst.msk [vmem:[%s259 + $0xf1] sm:$0xff] %vm203, %v191
      %281 = vst.msk [vmem:[%s259 + $0xf9] sm:$0xff] %vm203, %v192
      %282 = vst.msk [vmem:[%s259 + $0x109] sm:$0xff] %vm203, %v193
      %283 = vst.msk [vmem:[%s259 + $0x111] sm:$0xff] %vm203, %v194
      %284 = vst.msk [vmem:[%s259 + $0x121] sm:$0xff] %vm203, %v195
      %285 = vst.msk [vmem:[%s259 + $0x129] sm:$0xff] %vm203, %v196
      %286 = vst.msk [vmem:[%s259 + $0x139] sm:$0xff] %vm203, %v197
      %287 = vst.msk [vmem:[%s259 + $0x141] sm:$0xff] %vm203, %v198
      %288 = vst.msk [vmem:[%s259 + $0x151] sm:$0xff] %vm203, %v199
      %289 = vst.msk [vmem:[%s259 + $0x159] sm:$0xff] %vm203, %v200
      %290 = vst.msk [vmem:[%s259 + $0x169] sm:$0xff] %vm203, %v201
      %291 = vst.msk [vmem:[%s259 + $0x171] sm:$0xff] %vm203, %v202
      %v292 = vld [vmem:[#allocation2] sm:$0xff]
      %v293 = vld [vmem:[#allocation2 + $0x8] sm:$0xff]
      %v294 = vld [vmem:[#allocation2 + $0x10] sm:$0x3]
      %v295 = vld [vmem:[#allocation2 + $0x18] sm:$0xff]
      %v296 = vld [vmem:[#allocation2 + $0x20] sm:$0xff]
      %v297 = vld [vmem:[#allocation2 + $0x28] sm:$0x3]
      %v298 = vld [vmem:[#allocation2 + $0x30] sm:$0xff]
      %v299 = vld [vmem:[#allocation2 + $0x38] sm:$0xff]
      %v300 = vld [vmem:[#allocation2 + $0x40] sm:$0x3]
      %v301 = vld [vmem:[#allocation2 + $0x48] sm:$0xff]
      %v302 = vld [vmem:[#allocation2 + $0x50] sm:$0xff]
      %v303 = vld [vmem:[#allocation2 + $0x58] sm:$0x3]
      %v304 = vld [vmem:[#allocation2 + $0x60] sm:$0xff]
      %v305 = vld [vmem:[#allocation2 + $0x68] sm:$0xff]
      %v306 = vld [vmem:[#allocation2 + $0x70] sm:$0x3]
      %v307 = vld [vmem:[#allocation2 + $0x78] sm:$0xff]
      %v308 = vld [vmem:[#allocation2 + $0x80] sm:$0xff]
      %v309 = vld [vmem:[#allocation2 + $0x88] sm:$0x3]
      %v310 = vld [vmem:[#allocation2 + $0x90] sm:$0xff]
      %v311 = vld [vmem:[#allocation2 + $0x98] sm:$0xff]
      %v312 = vld [vmem:[#allocation2 + $0xa0] sm:$0x3]
      %v313 = vld [vmem:[#allocation2 + $0xa8] sm:$0xff]
      %v314 = vld [vmem:[#allocation2 + $0xb0] sm:$0xff]
      %v315 = vld [vmem:[#allocation2 + $0xb8] sm:$0x3]
      %v316 = vld [vmem:[#allocation2 + $0xc0] sm:$0xff]
      %v317 = vld [vmem:[#allocation2 + $0xc8] sm:$0xff]
      %v318 = vld [vmem:[#allocation2 + $0xd0] sm:$0x3]
      %v319 = vld [vmem:[#allocation2 + $0xd8] sm:$0xff]
      %v320 = vld [vmem:[#allocation2 + $0xe0] sm:$0xff]
      %v321 = vld [vmem:[#allocation2 + $0xe8] sm:$0x3]
      %v322 = vld [vmem:[#allocation2 + $0xf0] sm:$0xff]
      %v323 = vld [vmem:[#allocation2 + $0xf8] sm:$0xff]
      %v324 = vld [vmem:[#allocation2 + $0x100] sm:$0x3]
      %v325 = vld [vmem:[#allocation2 + $0x108] sm:$0xff]
      %v326 = vld [vmem:[#allocation2 + $0x110] sm:$0xff]
      %v327 = vld [vmem:[#allocation2 + $0x118] sm:$0x3]
      %v328 = vld [vmem:[#allocation2 + $0x120] sm:$0xff]
      %v329 = vld [vmem:[#allocation2 + $0x128] sm:$0xff]
      %v330 = vld [vmem:[#allocation2 + $0x130] sm:$0x3]
      %v331 = vld [vmem:[#allocation2 + $0x138] sm:$0xff]
      %v332 = vld [vmem:[#allocation2 + $0x140] sm:$0xff]
      %v333 = vld [vmem:[#allocation2 + $0x148] sm:$0x3]
      %v334 = vld [vmem:[#allocation2 + $0x150] sm:$0xff]
      %v335 = vld [vmem:[#allocation2 + $0x158] sm:$0xff]
      %v336 = vld [vmem:[#allocation2 + $0x160] sm:$0x3]
      %v337 = vld [vmem:[#allocation2 + $0x168] sm:$0xff]
      %v338 = vld [vmem:[#allocation2 + $0x170] sm:$0xff]
      %v339 = vld [vmem:[#allocation2 + $0x178] sm:$0x3]
      %v340 = vld [vmem:[#allocation2 + $0x180] sm:$0xff]
      %v341 = vld [vmem:[#allocation2 + $0x188] sm:$0xff]
      %v342 = vld [vmem:[#allocation2 + $0x190] sm:$0x3]
      %v343 = vld [vmem:[#allocation2 + $0x198] sm:$0xff]
      %v344 = vld [vmem:[#allocation2 + $0x1a0] sm:$0xff]
      %v345 = vld [vmem:[#allocation2 + $0x1a8] sm:$0x3]
      %vm394 = vcmask 1046528
      %v395 = vrot.slane %v292, 1
      %v396 = vrot.slane %v293, 1
      %v397 = vsel %vm394, %v395, %v396
      %v398 = vrot.slane %v294, 1
      %v399 = vsel %vm394, %v396, %v398
      %v400 = vrot.slane %v295, 1
      %v401 = vrot.slane %v296, 1
      %v402 = vsel %vm394, %v400, %v401
      %v403 = vrot.slane %v297, 1
      %v404 = vsel %vm394, %v401, %v403
      %v405 = vrot.slane %v298, 1
      %v406 = vrot.slane %v299, 1
      %v407 = vsel %vm394, %v405, %v406
      %v408 = vrot.slane %v300, 1
      %v409 = vsel %vm394, %v406, %v408
      %v410 = vrot.slane %v301, 1
      %v411 = vrot.slane %v302, 1
      %v412 = vsel %vm394, %v410, %v411
      %v413 = vrot.slane %v303, 1
      %v414 = vsel %vm394, %v411, %v413
      %v415 = vrot.slane %v304, 1
      %v416 = vrot.slane %v305, 1
      %v417 = vsel %vm394, %v415, %v416
      %v418 = vrot.slane %v306, 1
      %v419 = vsel %vm394, %v416, %v418
      %v420 = vrot.slane %v307, 1
      %v421 = vrot.slane %v308, 1
      %v422 = vsel %vm394, %v420, %v421
      %v423 = vrot.slane %v309, 1
      %v424 = vsel %vm394, %v421, %v423
      %v425 = vrot.slane %v310, 1
      %v426 = vrot.slane %v311, 1
      %v427 = vsel %vm394, %v425, %v426
      %v428 = vrot.slane %v312, 1
      %v429 = vsel %vm394, %v426, %v428
      %v430 = vrot.slane %v313, 1
      %v431 = vrot.slane %v314, 1
      %v432 = vsel %vm394, %v430, %v431
      %v433 = vrot.slane %v315, 1
      %v434 = vsel %vm394, %v431, %v433
      %v435 = vrot.slane %v316, 1
      %v436 = vrot.slane %v317, 1
      %v437 = vsel %vm394, %v435, %v436
      %v438 = vrot.slane %v318, 1
      %v439 = vsel %vm394, %v436, %v438
      %v440 = vrot.slane %v319, 1
      %v441 = vrot.slane %v320, 1
      %v442 = vsel %vm394, %v440, %v441
      %v443 = vrot.slane %v321, 1
      %v444 = vsel %vm394, %v441, %v443
      %v445 = vrot.slane %v322, 1
      %v446 = vrot.slane %v323, 1
      %v447 = vsel %vm394, %v445, %v446
      %v448 = vrot.slane %v324, 1
      %v449 = vsel %vm394, %v446, %v448
      %v450 = vrot.slane %v325, 1
      %v451 = vrot.slane %v326, 1
      %v452 = vsel %vm394, %v450, %v451
      %v453 = vrot.slane %v327, 1
      %v454 = vsel %vm394, %v451, %v453
      %v455 = vrot.slane %v328, 1
      %v456 = vrot.slane %v329, 1
      %v457 = vsel %vm394, %v455, %v456
      %v458 = vrot.slane %v330, 1
      %v459 = vsel %vm394, %v456, %v458
      %v460 = vrot.slane %v331, 1
      %v461 = vrot.slane %v332, 1
      %v462 = vsel %vm394, %v460, %v461
      %v463 = vrot.slane %v333, 1
      %v464 = vsel %vm394, %v461, %v463
      %v465 = vrot.slane %v334, 1
      %v466 = vrot.slane %v335, 1
      %v467 = vsel %vm394, %v465, %v466
      %v468 = vrot.slane %v336, 1
      %v469 = vsel %vm394, %v466, %v468
      %v470 = vrot.slane %v337, 1
      %v471 = vrot.slane %v338, 1
      %v472 = vsel %vm394, %v470, %v471
      %v473 = vrot.slane %v339, 1
      %v474 = vsel %vm394, %v471, %v473
      %vm475 = vcmask 1045504
      %v476 = vrot.slane %v292, 2
      %v477 = vrot.slane %v293, 2
      %v478 = vsel %vm475, %v476, %v477
      %v479 = vrot.slane %v294, 2
      %v480 = vsel %vm475, %v477, %v479
      %v481 = vrot.slane %v295, 2
      %v482 = vrot.slane %v296, 2
      %v483 = vsel %vm475, %v481, %v482
      %v484 = vrot.slane %v297, 2
      %v485 = vsel %vm475, %v482, %v484
      %v486 = vrot.slane %v298, 2
      %v487 = vrot.slane %v299, 2
      %v488 = vsel %vm475, %v486, %v487
      %v489 = vrot.slane %v300, 2
      %v490 = vsel %vm475, %v487, %v489
      %v491 = vrot.slane %v301, 2
      %v492 = vrot.slane %v302, 2
      %v493 = vsel %vm475, %v491, %v492
      %v494 = vrot.slane %v303, 2
      %v495 = vsel %vm475, %v492, %v494
      %v496 = vrot.slane %v304, 2
      %v497 = vrot.slane %v305, 2
      %v498 = vsel %vm475, %v496, %v497
      %v499 = vrot.slane %v306, 2
      %v500 = vsel %vm475, %v497, %v499
      %v501 = vrot.slane %v307, 2
      %v502 = vrot.slane %v308, 2
      %v503 = vsel %vm475, %v501, %v502
      %v504 = vrot.slane %v309, 2
      %v505 = vsel %vm475, %v502, %v504
      %v506 = vrot.slane %v310, 2
      %v507 = vrot.slane %v311, 2
      %v508 = vsel %vm475, %v506, %v507
      %v509 = vrot.slane %v312, 2
      %v510 = vsel %vm475, %v507, %v509
      %v511 = vrot.slane %v313, 2
      %v512 = vrot.slane %v314, 2
      %v513 = vsel %vm475, %v511, %v512
      %v514 = vrot.slane %v315, 2
      %v515 = vsel %vm475, %v512, %v514
      %v516 = vrot.slane %v316, 2
      %v517 = vrot.slane %v317, 2
      %v518 = vsel %vm475, %v516, %v517
      %v519 = vrot.slane %v318, 2
      %v520 = vsel %vm475, %v517, %v519
      %v521 = vrot.slane %v319, 2
      %v522 = vrot.slane %v320, 2
      %v523 = vsel %vm475, %v521, %v522
      %v524 = vrot.slane %v321, 2
      %v525 = vsel %vm475, %v522, %v524
      %v526 = vrot.slane %v322, 2
      %v527 = vrot.slane %v323, 2
      %v528 = vsel %vm475, %v526, %v527
      %v529 = vrot.slane %v324, 2
      %v530 = vsel %vm475, %v527, %v529
      %v531 = vrot.slane %v325, 2
      %v532 = vrot.slane %v326, 2
      %v533 = vsel %vm475, %v531, %v532
      %v534 = vrot.slane %v327, 2
      %v535 = vsel %vm475, %v532, %v534
      %v536 = vrot.slane %v328, 2
      %v537 = vrot.slane %v329, 2
      %v538 = vsel %vm475, %v536, %v537
      %v539 = vrot.slane %v330, 2
      %v540 = vsel %vm475, %v537, %v539
      %v541 = vrot.slane %v331, 2
      %v542 = vrot.slane %v332, 2
      %v543 = vsel %vm475, %v541, %v542
      %v544 = vrot.slane %v333, 2
      %v545 = vsel %vm475, %v542, %v544
      %v546 = vrot.slane %v334, 2
      %v547 = vrot.slane %v335, 2
      %v548 = vsel %vm475, %v546, %v547
      %v549 = vrot.slane %v336, 2
      %v550 = vsel %vm475, %v547, %v549
      %v551 = vrot.slane %v337, 2
      %v552 = vrot.slane %v338, 2
      %v553 = vsel %vm475, %v551, %v552
      %v554 = vrot.slane %v339, 2
      %v555 = vsel %vm475, %v552, %v554
      %v559 = vrot.slane %v340, 1
      %v560 = vrot.slane %v341, 1
      %v561 = vsel %vm394, %v559, %v560
      %v562 = vrot.slane %v342, 1
      %v563 = vsel %vm394, %v560, %v562
      %v564 = vrot.slane %v340, 2
      %v565 = vrot.slane %v341, 2
      %v566 = vsel %vm475, %v564, %v565
      %v567 = vrot.slane %v342, 2
      %v568 = vsel %vm475, %v565, %v567
      %v572 = vrot.slane %v343, 1
      %v573 = vrot.slane %v344, 1
      %v574 = vsel %vm394, %v572, %v573
      %v575 = vrot.slane %v345, 1
      %v576 = vsel %vm394, %v573, %v575
      %v577 = vrot.slane %v343, 2
      %v578 = vrot.slane %v344, 2
      %v579 = vsel %vm475, %v577, %v578
      %v580 = vrot.slane %v345, 2
      %v581 = vsel %vm475, %v578, %v580
      %582 = vrot.lane.b32.xlu0 %v397, 4
      %v583 = vpop.permute.xlu0 %582
      %584 = vrot.lane.b32.xlu0 %v399, 4
      %v585 = vpop.permute.xlu0 %584
      %586 = vrot.lane.b32.xlu0 %v402, 4
      %v587 = vpop.permute.xlu0 %586
      %588 = vrot.lane.b32.xlu0 %v404, 4
      %v589 = vpop.permute.xlu0 %588
      %590 = vrot.lane.b32.xlu0 %v407, 4
      %v591 = vpop.permute.xlu0 %590
      %592 = vrot.lane.b32.xlu0 %v409, 4
      %v593 = vpop.permute.xlu0 %592
      %594 = vrot.lane.b32.xlu0 %v412, 4
      %v595 = vpop.permute.xlu0 %594
      %596 = vrot.lane.b32.xlu0 %v414, 4
      %v597 = vpop.permute.xlu0 %596
      %598 = vrot.lane.b32.xlu0 %v417, 4
      %v599 = vpop.permute.xlu0 %598
      %600 = vrot.lane.b32.xlu0 %v419, 4
      %v601 = vpop.permute.xlu0 %600
      %602 = vrot.lane.b32.xlu0 %v422, 4
      %v603 = vpop.permute.xlu0 %602
      %604 = vrot.lane.b32.xlu0 %v424, 4
      %v605 = vpop.permute.xlu0 %604
      %606 = vrot.lane.b32.xlu0 %v427, 4
      %v607 = vpop.permute.xlu0 %606
      %608 = vrot.lane.b32.xlu0 %v429, 4
      %v609 = vpop.permute.xlu0 %608
      %610 = vrot.lane.b32.xlu0 %v432, 4
      %v611 = vpop.permute.xlu0 %610
      %612 = vrot.lane.b32.xlu0 %v434, 4
      %v613 = vpop.permute.xlu0 %612
      %614 = vrot.lane.b32.xlu0 %v437, 4
      %v615 = vpop.permute.xlu0 %614
      %616 = vrot.lane.b32.xlu0 %v439, 4
      %v617 = vpop.permute.xlu0 %616
      %618 = vrot.lane.b32.xlu0 %v442, 4
      %v619 = vpop.permute.xlu0 %618
      %620 = vrot.lane.b32.xlu0 %v444, 4
      %v621 = vpop.permute.xlu0 %620
      %622 = vrot.lane.b32.xlu0 %v447, 4
      %v623 = vpop.permute.xlu0 %622
      %624 = vrot.lane.b32.xlu0 %v449, 4
      %v625 = vpop.permute.xlu0 %624
      %626 = vrot.lane.b32.xlu0 %v452, 4
      %v627 = vpop.permute.xlu0 %626
      %628 = vrot.lane.b32.xlu0 %v454, 4
      %v629 = vpop.permute.xlu0 %628
      %630 = vrot.lane.b32.xlu0 %v457, 4
      %v631 = vpop.permute.xlu0 %630
      %632 = vrot.lane.b32.xlu0 %v459, 4
      %v633 = vpop.permute.xlu0 %632
      %634 = vrot.lane.b32.xlu0 %v462, 4
      %v635 = vpop.permute.xlu0 %634
      %636 = vrot.lane.b32.xlu0 %v464, 4
      %v637 = vpop.permute.xlu0 %636
      %638 = vrot.lane.b32.xlu0 %v467, 4
      %v639 = vpop.permute.xlu0 %638
      %640 = vrot.lane.b32.xlu0 %v469, 4
      %v641 = vpop.permute.xlu0 %640
      %642 = vrot.lane.b32.xlu0 %v472, 4
      %v643 = vpop.permute.xlu0 %642
      %644 = vrot.lane.b32.xlu0 %v474, 4
      %v645 = vpop.permute.xlu0 %644
      %678 = vrot.lane.b32.xlu0 %v478, 8
      %v679 = vpop.permute.xlu0 %678
      %680 = vrot.lane.b32.xlu0 %v480, 8
      %v681 = vpop.permute.xlu0 %680
      %682 = vrot.lane.b32.xlu0 %v483, 8
      %v683 = vpop.permute.xlu0 %682
      %684 = vrot.lane.b32.xlu0 %v485, 8
      %v685 = vpop.permute.xlu0 %684
      %686 = vrot.lane.b32.xlu0 %v488, 8
      %v687 = vpop.permute.xlu0 %686
      %688 = vrot.lane.b32.xlu0 %v490, 8
      %v689 = vpop.permute.xlu0 %688
      %690 = vrot.lane.b32.xlu0 %v493, 8
      %v691 = vpop.permute.xlu0 %690
      %692 = vrot.lane.b32.xlu0 %v495, 8
      %v693 = vpop.permute.xlu0 %692
      %694 = vrot.lane.b32.xlu0 %v498, 8
      %v695 = vpop.permute.xlu0 %694
      %696 = vrot.lane.b32.xlu0 %v500, 8
      %v697 = vpop.permute.xlu0 %696
      %698 = vrot.lane.b32.xlu0 %v503, 8
      %v699 = vpop.permute.xlu0 %698
      %700 = vrot.lane.b32.xlu0 %v505, 8
      %v701 = vpop.permute.xlu0 %700
      %702 = vrot.lane.b32.xlu0 %v508, 8
      %v703 = vpop.permute.xlu0 %702
      %704 = vrot.lane.b32.xlu0 %v510, 8
      %v705 = vpop.permute.xlu0 %704
      %706 = vrot.lane.b32.xlu0 %v513, 8
      %v707 = vpop.permute.xlu0 %706
      %708 = vrot.lane.b32.xlu0 %v515, 8
      %v709 = vpop.permute.xlu0 %708
      %710 = vrot.lane.b32.xlu0 %v518, 8
      %v711 = vpop.permute.xlu0 %710
      %712 = vrot.lane.b32.xlu0 %v520, 8
      %v713 = vpop.permute.xlu0 %712
      %714 = vrot.lane.b32.xlu0 %v523, 8
      %v715 = vpop.permute.xlu0 %714
      %716 = vrot.lane.b32.xlu0 %v525, 8
      %v717 = vpop.permute.xlu0 %716
      %718 = vrot.lane.b32.xlu0 %v528, 8
      %v719 = vpop.permute.xlu0 %718
      %720 = vrot.lane.b32.xlu0 %v530, 8
      %v721 = vpop.permute.xlu0 %720
      %722 = vrot.lane.b32.xlu0 %v533, 8
      %v723 = vpop.permute.xlu0 %722
      %724 = vrot.lane.b32.xlu0 %v535, 8
      %v725 = vpop.permute.xlu0 %724
      %726 = vrot.lane.b32.xlu0 %v538, 8
      %v727 = vpop.permute.xlu0 %726
      %728 = vrot.lane.b32.xlu0 %v540, 8
      %v729 = vpop.permute.xlu0 %728
      %730 = vrot.lane.b32.xlu0 %v543, 8
      %v731 = vpop.permute.xlu0 %730
      %732 = vrot.lane.b32.xlu0 %v545, 8
      %v733 = vpop.permute.xlu0 %732
      %734 = vrot.lane.b32.xlu0 %v548, 8
      %v735 = vpop.permute.xlu0 %734
      %736 = vrot.lane.b32.xlu0 %v550, 8
      %v737 = vpop.permute.xlu0 %736
      %738 = vrot.lane.b32.xlu0 %v553, 8
      %v739 = vpop.permute.xlu0 %738
      %740 = vrot.lane.b32.xlu0 %v555, 8
      %v741 = vpop.permute.xlu0 %740
      %774 = vrot.lane.b32.xlu0 %v295, 12
      %v775 = vpop.permute.xlu0 %774
      %776 = vrot.lane.b32.xlu0 %v296, 12
      %v777 = vpop.permute.xlu0 %776
      %778 = vrot.lane.b32.xlu0 %v298, 12
      %v779 = vpop.permute.xlu0 %778
      %780 = vrot.lane.b32.xlu0 %v299, 12
      %v781 = vpop.permute.xlu0 %780
      %782 = vrot.lane.b32.xlu0 %v301, 12
      %v783 = vpop.permute.xlu0 %782
      %784 = vrot.lane.b32.xlu0 %v302, 12
      %v785 = vpop.permute.xlu0 %784
      %786 = vrot.lane.b32.xlu0 %v304, 12
      %v787 = vpop.permute.xlu0 %786
      %788 = vrot.lane.b32.xlu0 %v305, 12
      %v789 = vpop.permute.xlu0 %788
      %790 = vrot.lane.b32.xlu0 %v307, 12
      %v791 = vpop.permute.xlu0 %790
      %792 = vrot.lane.b32.xlu0 %v308, 12
      %v793 = vpop.permute.xlu0 %792
      %794 = vrot.lane.b32.xlu0 %v310, 12
      %v795 = vpop.permute.xlu0 %794
      %796 = vrot.lane.b32.xlu0 %v311, 12
      %v797 = vpop.permute.xlu0 %796
      %798 = vrot.lane.b32.xlu0 %v313, 12
      %v799 = vpop.permute.xlu0 %798
      %800 = vrot.lane.b32.xlu0 %v314, 12
      %v801 = vpop.permute.xlu0 %800
      %802 = vrot.lane.b32.xlu0 %v316, 12
      %v803 = vpop.permute.xlu0 %802
      %804 = vrot.lane.b32.xlu0 %v317, 12
      %v805 = vpop.permute.xlu0 %804
      %806 = vrot.lane.b32.xlu0 %v319, 12
      %v807 = vpop.permute.xlu0 %806
      %808 = vrot.lane.b32.xlu0 %v320, 12
      %v809 = vpop.permute.xlu0 %808
      %810 = vrot.lane.b32.xlu0 %v322, 12
      %v811 = vpop.permute.xlu0 %810
      %812 = vrot.lane.b32.xlu0 %v323, 12
      %v813 = vpop.permute.xlu0 %812
      %814 = vrot.lane.b32.xlu0 %v325, 12
      %v815 = vpop.permute.xlu0 %814
      %816 = vrot.lane.b32.xlu0 %v326, 12
      %v817 = vpop.permute.xlu0 %816
      %818 = vrot.lane.b32.xlu0 %v328, 12
      %v819 = vpop.permute.xlu0 %818
      %820 = vrot.lane.b32.xlu0 %v329, 12
      %v821 = vpop.permute.xlu0 %820
      %822 = vrot.lane.b32.xlu0 %v331, 12
      %v823 = vpop.permute.xlu0 %822
      %824 = vrot.lane.b32.xlu0 %v332, 12
      %v825 = vpop.permute.xlu0 %824
      %826 = vrot.lane.b32.xlu0 %v334, 12
      %v827 = vpop.permute.xlu0 %826
      %828 = vrot.lane.b32.xlu0 %v335, 12
      %v829 = vpop.permute.xlu0 %828
      %830 = vrot.lane.b32.xlu0 %v337, 12
      %v831 = vpop.permute.xlu0 %830
      %832 = vrot.lane.b32.xlu0 %v338, 12
      %v833 = vpop.permute.xlu0 %832
      %834 = vrot.lane.b32.xlu0 %v340, 12
      %v835 = vpop.permute.xlu0 %834
      %836 = vrot.lane.b32.xlu0 %v341, 12
      %v837 = vpop.permute.xlu0 %836
      %870 = vrot.lane.b32.xlu0 %v402, 16
      %v871 = vpop.permute.xlu0 %870
      %872 = vrot.lane.b32.xlu0 %v404, 16
      %v873 = vpop.permute.xlu0 %872
      %874 = vrot.lane.b32.xlu0 %v407, 16
      %v875 = vpop.permute.xlu0 %874
      %876 = vrot.lane.b32.xlu0 %v409, 16
      %v877 = vpop.permute.xlu0 %876
      %878 = vrot.lane.b32.xlu0 %v412, 16
      %v879 = vpop.permute.xlu0 %878
      %880 = vrot.lane.b32.xlu0 %v414, 16
      %v881 = vpop.permute.xlu0 %880
      %882 = vrot.lane.b32.xlu0 %v417, 16
      %v883 = vpop.permute.xlu0 %882
      %884 = vrot.lane.b32.xlu0 %v419, 16
      %v885 = vpop.permute.xlu0 %884
      %886 = vrot.lane.b32.xlu0 %v422, 16
      %v887 = vpop.permute.xlu0 %886
      %888 = vrot.lane.b32.xlu0 %v424, 16
      %v889 = vpop.permute.xlu0 %888
      %890 = vrot.lane.b32.xlu0 %v427, 16
      %v891 = vpop.permute.xlu0 %890
      %892 = vrot.lane.b32.xlu0 %v429, 16
      %v893 = vpop.permute.xlu0 %892
      %894 = vrot.lane.b32.xlu0 %v432, 16
      %v895 = vpop.permute.xlu0 %894
      %896 = vrot.lane.b32.xlu0 %v434, 16
      %v897 = vpop.permute.xlu0 %896
      %898 = vrot.lane.b32.xlu0 %v437, 16
      %v899 = vpop.permute.xlu0 %898
      %900 = vrot.lane.b32.xlu0 %v439, 16
      %v901 = vpop.permute.xlu0 %900
      %902 = vrot.lane.b32.xlu0 %v442, 16
      %v903 = vpop.permute.xlu0 %902
      %904 = vrot.lane.b32.xlu0 %v444, 16
      %v905 = vpop.permute.xlu0 %904
      %906 = vrot.lane.b32.xlu0 %v447, 16
      %v907 = vpop.permute.xlu0 %906
      %908 = vrot.lane.b32.xlu0 %v449, 16
      %v909 = vpop.permute.xlu0 %908
      %910 = vrot.lane.b32.xlu0 %v452, 16
      %v911 = vpop.permute.xlu0 %910
      %912 = vrot.lane.b32.xlu0 %v454, 16
      %v913 = vpop.permute.xlu0 %912
      %914 = vrot.lane.b32.xlu0 %v457, 16
      %v915 = vpop.permute.xlu0 %914
      %916 = vrot.lane.b32.xlu0 %v459, 16
      %v917 = vpop.permute.xlu0 %916
      %918 = vrot.lane.b32.xlu0 %v462, 16
      %v919 = vpop.permute.xlu0 %918
      %920 = vrot.lane.b32.xlu0 %v464, 16
      %v921 = vpop.permute.xlu0 %920
      %922 = vrot.lane.b32.xlu0 %v467, 16
      %v923 = vpop.permute.xlu0 %922
      %924 = vrot.lane.b32.xlu0 %v469, 16
      %v925 = vpop.permute.xlu0 %924
      %926 = vrot.lane.b32.xlu0 %v472, 16
      %v927 = vpop.permute.xlu0 %926
      %928 = vrot.lane.b32.xlu0 %v474, 16
      %v929 = vpop.permute.xlu0 %928
      %930 = vrot.lane.b32.xlu0 %v561, 16
      %v931 = vpop.permute.xlu0 %930
      %932 = vrot.lane.b32.xlu0 %v563, 16
      %v933 = vpop.permute.xlu0 %932
      %966 = vrot.lane.b32.xlu0 %v483, 20
      %v967 = vpop.permute.xlu0 %966
      %968 = vrot.lane.b32.xlu0 %v485, 20
      %v969 = vpop.permute.xlu0 %968
      %970 = vrot.lane.b32.xlu0 %v488, 20
      %v971 = vpop.permute.xlu0 %970
      %972 = vrot.lane.b32.xlu0 %v490, 20
      %v973 = vpop.permute.xlu0 %972
      %974 = vrot.lane.b32.xlu0 %v493, 20
      %v975 = vpop.permute.xlu0 %974
      %976 = vrot.lane.b32.xlu0 %v495, 20
      %v977 = vpop.permute.xlu0 %976
      %978 = vrot.lane.b32.xlu0 %v498, 20
      %v979 = vpop.permute.xlu0 %978
      %980 = vrot.lane.b32.xlu0 %v500, 20
      %v981 = vpop.permute.xlu0 %980
      %982 = vrot.lane.b32.xlu0 %v503, 20
      %v983 = vpop.permute.xlu0 %982
      %984 = vrot.lane.b32.xlu0 %v505, 20
      %v985 = vpop.permute.xlu0 %984
      %986 = vrot.lane.b32.xlu0 %v508, 20
      %v987 = vpop.permute.xlu0 %986
      %988 = vrot.lane.b32.xlu0 %v510, 20
      %v989 = vpop.permute.xlu0 %988
      %990 = vrot.lane.b32.xlu0 %v513, 20
      %v991 = vpop.permute.xlu0 %990
      %992 = vrot.lane.b32.xlu0 %v515, 20
      %v993 = vpop.permute.xlu0 %992
      %994 = vrot.lane.b32.xlu0 %v518, 20
      %v995 = vpop.permute.xlu0 %994
      %996 = vrot.lane.b32.xlu0 %v520, 20
      %v997 = vpop.permute.xlu0 %996
      %998 = vrot.lane.b32.xlu0 %v523, 20
      %v999 = vpop.permute.xlu0 %998
      %1000 = vrot.lane.b32.xlu0 %v525, 20
      %v1001 = vpop.permute.xlu0 %1000
      %1002 = vrot.lane.b32.xlu0 %v528, 20
      %v1003 = vpop.permute.xlu0 %1002
      %1004 = vrot.lane.b32.xlu0 %v530, 20
      %v1005 = vpop.permute.xlu0 %1004
      %1006 = vrot.lane.b32.xlu0 %v533, 20
      %v1007 = vpop.permute.xlu0 %1006
      %1008 = vrot.lane.b32.xlu0 %v535, 20
      %v1009 = vpop.permute.xlu0 %1008
      %1010 = vrot.lane.b32.xlu0 %v538, 20
      %v1011 = vpop.permute.xlu0 %1010
      %1012 = vrot.lane.b32.xlu0 %v540, 20
      %v1013 = vpop.permute.xlu0 %1012
      %1014 = vrot.lane.b32.xlu0 %v543, 20
      %v1015 = vpop.permute.xlu0 %1014
      %1016 = vrot.lane.b32.xlu0 %v545, 20
      %v1017 = vpop.permute.xlu0 %1016
      %1018 = vrot.lane.b32.xlu0 %v548, 20
      %v1019 = vpop.permute.xlu0 %1018
      %1020 = vrot.lane.b32.xlu0 %v550, 20
      %v1021 = vpop.permute.xlu0 %1020
      %1022 = vrot.lane.b32.xlu0 %v553, 20
      %v1023 = vpop.permute.xlu0 %1022
      %1024 = vrot.lane.b32.xlu0 %v555, 20
      %v1025 = vpop.permute.xlu0 %1024
      %1026 = vrot.lane.b32.xlu0 %v566, 20
      %v1027 = vpop.permute.xlu0 %1026
      %1028 = vrot.lane.b32.xlu0 %v568, 20
      %v1029 = vpop.permute.xlu0 %1028
      %1062 = vrot.lane.b32.xlu0 %v298, 24
      %v1063 = vpop.permute.xlu0 %1062
      %1064 = vrot.lane.b32.xlu0 %v299, 24
      %v1065 = vpop.permute.xlu0 %1064
      %1066 = vrot.lane.b32.xlu0 %v301, 24
      %v1067 = vpop.permute.xlu0 %1066
      %1068 = vrot.lane.b32.xlu0 %v302, 24
      %v1069 = vpop.permute.xlu0 %1068
      %1070 = vrot.lane.b32.xlu0 %v304, 24
      %v1071 = vpop.permute.xlu0 %1070
      %1072 = vrot.lane.b32.xlu0 %v305, 24
      %v1073 = vpop.permute.xlu0 %1072
      %1074 = vrot.lane.b32.xlu0 %v307, 24
      %v1075 = vpop.permute.xlu0 %1074
      %1076 = vrot.lane.b32.xlu0 %v308, 24
      %v1077 = vpop.permute.xlu0 %1076
      %1078 = vrot.lane.b32.xlu0 %v310, 24
      %v1079 = vpop.permute.xlu0 %1078
      %1080 = vrot.lane.b32.xlu0 %v311, 24
      %v1081 = vpop.permute.xlu0 %1080
      %1082 = vrot.lane.b32.xlu0 %v313, 24
      %v1083 = vpop.permute.xlu0 %1082
      %1084 = vrot.lane.b32.xlu0 %v314, 24
      %v1085 = vpop.permute.xlu0 %1084
      %1086 = vrot.lane.b32.xlu0 %v316, 24
      %v1087 = vpop.permute.xlu0 %1086
      %1088 = vrot.lane.b32.xlu0 %v317, 24
      %v1089 = vpop.permute.xlu0 %1088
      %1090 = vrot.lane.b32.xlu0 %v319, 24
      %v1091 = vpop.permute.xlu0 %1090
      %1092 = vrot.lane.b32.xlu0 %v320, 24
      %v1093 = vpop.permute.xlu0 %1092
      %1094 = vrot.lane.b32.xlu0 %v322, 24
      %v1095 = vpop.permute.xlu0 %1094
      %1096 = vrot.lane.b32.xlu0 %v323, 24
      %v1097 = vpop.permute.xlu0 %1096
      %1098 = vrot.lane.b32.xlu0 %v325, 24
      %v1099 = vpop.permute.xlu0 %1098
      %1100 = vrot.lane.b32.xlu0 %v326, 24
      %v1101 = vpop.permute.xlu0 %1100
      %1102 = vrot.lane.b32.xlu0 %v328, 24
      %v1103 = vpop.permute.xlu0 %1102
      %1104 = vrot.lane.b32.xlu0 %v329, 24
      %v1105 = vpop.permute.xlu0 %1104
      %1106 = vrot.lane.b32.xlu0 %v331, 24
      %v1107 = vpop.permute.xlu0 %1106
      %1108 = vrot.lane.b32.xlu0 %v332, 24
      %v1109 = vpop.permute.xlu0 %1108
      %1110 = vrot.lane.b32.xlu0 %v334, 24
      %v1111 = vpop.permute.xlu0 %1110
      %1112 = vrot.lane.b32.xlu0 %v335, 24
      %v1113 = vpop.permute.xlu0 %1112
      %1114 = vrot.lane.b32.xlu0 %v337, 24
      %v1115 = vpop.permute.xlu0 %1114
      %1116 = vrot.lane.b32.xlu0 %v338, 24
      %v1117 = vpop.permute.xlu0 %1116
      %1118 = vrot.lane.b32.xlu0 %v340, 24
      %v1119 = vpop.permute.xlu0 %1118
      %1120 = vrot.lane.b32.xlu0 %v341, 24
      %v1121 = vpop.permute.xlu0 %1120
      %1122 = vrot.lane.b32.xlu0 %v343, 24
      %v1123 = vpop.permute.xlu0 %1122
      %1124 = vrot.lane.b32.xlu0 %v344, 24
      %v1125 = vpop.permute.xlu0 %1124
      %1158 = vrot.lane.b32.xlu0 %v407, 28
      %v1159 = vpop.permute.xlu0 %1158
      %1160 = vrot.lane.b32.xlu0 %v409, 28
      %v1161 = vpop.permute.xlu0 %1160
      %1162 = vrot.lane.b32.xlu0 %v412, 28
      %v1163 = vpop.permute.xlu0 %1162
      %1164 = vrot.lane.b32.xlu0 %v414, 28
      %v1165 = vpop.permute.xlu0 %1164
      %1166 = vrot.lane.b32.xlu0 %v417, 28
      %v1167 = vpop.permute.xlu0 %1166
      %1168 = vrot.lane.b32.xlu0 %v419, 28
      %v1169 = vpop.permute.xlu0 %1168
      %1170 = vrot.lane.b32.xlu0 %v422, 28
      %v1171 = vpop.permute.xlu0 %1170
      %1172 = vrot.lane.b32.xlu0 %v424, 28
      %v1173 = vpop.permute.xlu0 %1172
      %1174 = vrot.lane.b32.xlu0 %v427, 28
      %v1175 = vpop.permute.xlu0 %1174
      %1176 = vrot.lane.b32.xlu0 %v429, 28
      %v1177 = vpop.permute.xlu0 %1176
      %1178 = vrot.lane.b32.xlu0 %v432, 28
      %v1179 = vpop.permute.xlu0 %1178
      %1180 = vrot.lane.b32.xlu0 %v434, 28
      %v1181 = vpop.permute.xlu0 %1180
      %1182 = vrot.lane.b32.xlu0 %v437, 28
      %v1183 = vpop.permute.xlu0 %1182
      %1184 = vrot.lane.b32.xlu0 %v439, 28
      %v1185 = vpop.permute.xlu0 %1184
      %1186 = vrot.lane.b32.xlu0 %v442, 28
      %v1187 = vpop.permute.xlu0 %1186
      %1188 = vrot.lane.b32.xlu0 %v444, 28
      %v1189 = vpop.permute.xlu0 %1188
      %1190 = vrot.lane.b32.xlu0 %v447, 28
      %v1191 = vpop.permute.xlu0 %1190
      %1192 = vrot.lane.b32.xlu0 %v449, 28
      %v1193 = vpop.permute.xlu0 %1192
      %1194 = vrot.lane.b32.xlu0 %v452, 28
      %v1195 = vpop.permute.xlu0 %1194
      %1196 = vrot.lane.b32.xlu0 %v454, 28
      %v1197 = vpop.permute.xlu0 %1196
      %1198 = vrot.lane.b32.xlu0 %v457, 28
      %v1199 = vpop.permute.xlu0 %1198
      %1200 = vrot.lane.b32.xlu0 %v459, 28
      %v1201 = vpop.permute.xlu0 %1200
      %1202 = vrot.lane.b32.xlu0 %v462, 28
      %v1203 = vpop.permute.xlu0 %1202
      %1204 = vrot.lane.b32.xlu0 %v464, 28
      %v1205 = vpop.permute.xlu0 %1204
      %1206 = vrot.lane.b32.xlu0 %v467, 28
      %v1207 = vpop.permute.xlu0 %1206
      %1208 = vrot.lane.b32.xlu0 %v469, 28
      %v1209 = vpop.permute.xlu0 %1208
      %1210 = vrot.lane.b32.xlu0 %v472, 28
      %v1211 = vpop.permute.xlu0 %1210
      %1212 = vrot.lane.b32.xlu0 %v474, 28
      %v1213 = vpop.permute.xlu0 %1212
      %1214 = vrot.lane.b32.xlu0 %v561, 28
      %v1215 = vpop.permute.xlu0 %1214
      %1216 = vrot.lane.b32.xlu0 %v563, 28
      %v1217 = vpop.permute.xlu0 %1216
      %1218 = vrot.lane.b32.xlu0 %v574, 28
      %v1219 = vpop.permute.xlu0 %1218
      %1220 = vrot.lane.b32.xlu0 %v576, 28
      %v1221 = vpop.permute.xlu0 %1220
      %1254 = vrot.lane.b32.xlu0 %v488, 32
      %v1255 = vpop.permute.xlu0 %1254
      %1256 = vrot.lane.b32.xlu0 %v490, 32
      %v1257 = vpop.permute.xlu0 %1256
      %1258 = vrot.lane.b32.xlu0 %v493, 32
      %v1259 = vpop.permute.xlu0 %1258
      %1260 = vrot.lane.b32.xlu0 %v495, 32
      %v1261 = vpop.permute.xlu0 %1260
      %1262 = vrot.lane.b32.xlu0 %v498, 32
      %v1263 = vpop.permute.xlu0 %1262
      %1264 = vrot.lane.b32.xlu0 %v500, 32
      %v1265 = vpop.permute.xlu0 %1264
      %1266 = vrot.lane.b32.xlu0 %v503, 32
      %v1267 = vpop.permute.xlu0 %1266
      %1268 = vrot.lane.b32.xlu0 %v505, 32
      %v1269 = vpop.permute.xlu0 %1268
      %1270 = vrot.lane.b32.xlu0 %v508, 32
      %v1271 = vpop.permute.xlu0 %1270
      %1272 = vrot.lane.b32.xlu0 %v510, 32
      %v1273 = vpop.permute.xlu0 %1272
      %1274 = vrot.lane.b32.xlu0 %v513, 32
      %v1275 = vpop.permute.xlu0 %1274
      %1276 = vrot.lane.b32.xlu0 %v515, 32
      %v1277 = vpop.permute.xlu0 %1276
      %1278 = vrot.lane.b32.xlu0 %v518, 32
      %v1279 = vpop.permute.xlu0 %1278
      %1280 = vrot.lane.b32.xlu0 %v520, 32
      %v1281 = vpop.permute.xlu0 %1280
      %1282 = vrot.lane.b32.xlu0 %v523, 32
      %v1283 = vpop.permute.xlu0 %1282
      %1284 = vrot.lane.b32.xlu0 %v525, 32
      %v1285 = vpop.permute.xlu0 %1284
      %1286 = vrot.lane.b32.xlu0 %v528, 32
      %v1287 = vpop.permute.xlu0 %1286
      %1288 = vrot.lane.b32.xlu0 %v530, 32
      %v1289 = vpop.permute.xlu0 %1288
      %1290 = vrot.lane.b32.xlu0 %v533, 32
      %v1291 = vpop.permute.xlu0 %1290
      %1292 = vrot.lane.b32.xlu0 %v535, 32
      %v1293 = vpop.permute.xlu0 %1292
      %1294 = vrot.lane.b32.xlu0 %v538, 32
      %v1295 = vpop.permute.xlu0 %1294
      %1296 = vrot.lane.b32.xlu0 %v540, 32
      %v1297 = vpop.permute.xlu0 %1296
      %1298 = vrot.lane.b32.xlu0 %v543, 32
      %v1299 = vpop.permute.xlu0 %1298
      %1300 = vrot.lane.b32.xlu0 %v545, 32
      %v1301 = vpop.permute.xlu0 %1300
      %1302 = vrot.lane.b32.xlu0 %v548, 32
      %v1303 = vpop.permute.xlu0 %1302
      %1304 = vrot.lane.b32.xlu0 %v550, 32
      %v1305 = vpop.permute.xlu0 %1304
      %1306 = vrot.lane.b32.xlu0 %v553, 32
      %v1307 = vpop.permute.xlu0 %1306
      %1308 = vrot.lane.b32.xlu0 %v555, 32
      %v1309 = vpop.permute.xlu0 %1308
      %1310 = vrot.lane.b32.xlu0 %v566, 32
      %v1311 = vpop.permute.xlu0 %1310
      %1312 = vrot.lane.b32.xlu0 %v568, 32
      %v1313 = vpop.permute.xlu0 %1312
      %1314 = vrot.lane.b32.xlu0 %v579, 32
      %v1315 = vpop.permute.xlu0 %1314
      %1316 = vrot.lane.b32.xlu0 %v581, 32
      %v1317 = vpop.permute.xlu0 %1316
      %v1350 = vsel %vm203, %v292, %v583
      %v1351 = vsel %vm203, %v293, %v585
      %v1352 = vsel %vm203, %v295, %v587
      %v1353 = vsel %vm203, %v296, %v589
      %v1354 = vsel %vm203, %v298, %v591
      %v1355 = vsel %vm203, %v299, %v593
      %v1356 = vsel %vm203, %v301, %v595
      %v1357 = vsel %vm203, %v302, %v597
      %v1358 = vsel %vm203, %v304, %v599
      %v1359 = vsel %vm203, %v305, %v601
      %v1360 = vsel %vm203, %v307, %v603
      %v1361 = vsel %vm203, %v308, %v605
      %v1362 = vsel %vm203, %v310, %v607
      %v1363 = vsel %vm203, %v311, %v609
      %v1364 = vsel %vm203, %v313, %v611
      %v1365 = vsel %vm203, %v314, %v613
      %v1366 = vsel %vm203, %v316, %v615
      %v1367 = vsel %vm203, %v317, %v617
      %v1368 = vsel %vm203, %v319, %v619
      %v1369 = vsel %vm203, %v320, %v621
      %v1370 = vsel %vm203, %v322, %v623
      %v1371 = vsel %vm203, %v323, %v625
      %v1372 = vsel %vm203, %v325, %v627
      %v1373 = vsel %vm203, %v326, %v629
      %v1374 = vsel %vm203, %v328, %v631
      %v1375 = vsel %vm203, %v329, %v633
      %v1376 = vsel %vm203, %v331, %v635
      %v1377 = vsel %vm203, %v332, %v637
      %v1378 = vsel %vm203, %v334, %v639
      %v1379 = vsel %vm203, %v335, %v641
      %v1380 = vsel %vm203, %v337, %v643
      %v1381 = vsel %vm203, %v338, %v645
      %vm1382 = vcmask 64512
      %v1383 = vsel %vm1382, %v1350, %v679
      %v1384 = vsel %vm1382, %v1351, %v681
      %v1385 = vsel %vm1382, %v1352, %v683
      %v1386 = vsel %vm1382, %v1353, %v685
      %v1387 = vsel %vm1382, %v1354, %v687
      %v1388 = vsel %vm1382, %v1355, %v689
      %v1389 = vsel %vm1382, %v1356, %v691
      %v1390 = vsel %vm1382, %v1357, %v693
      %v1391 = vsel %vm1382, %v1358, %v695
      %v1392 = vsel %vm1382, %v1359, %v697
      %v1393 = vsel %vm1382, %v1360, %v699
      %v1394 = vsel %vm1382, %v1361, %v701
      %v1395 = vsel %vm1382, %v1362, %v703
      %v1396 = vsel %vm1382, %v1363, %v705
      %v1397 = vsel %vm1382, %v1364, %v707
      %v1398 = vsel %vm1382, %v1365, %v709
      %v1399 = vsel %vm1382, %v1366, %v711
      %v1400 = vsel %vm1382, %v1367, %v713
      %v1401 = vsel %vm1382, %v1368, %v715
      %v1402 = vsel %vm1382, %v1369, %v717
      %v1403 = vsel %vm1382, %v1370, %v719
      %v1404 = vsel %vm1382, %v1371, %v721
      %v1405 = vsel %vm1382, %v1372, %v723
      %v1406 = vsel %vm1382, %v1373, %v725
      %v1407 = vsel %vm1382, %v1374, %v727
      %v1408 = vsel %vm1382, %v1375, %v729
      %v1409 = vsel %vm1382, %v1376, %v731
      %v1410 = vsel %vm1382, %v1377, %v733
      %v1411 = vsel %vm1382, %v1378, %v735
      %v1412 = vsel %vm1382, %v1379, %v737
      %v1413 = vsel %vm1382, %v1380, %v739
      %v1414 = vsel %vm1382, %v1381, %v741
      %vm1415 = vcmask 97280
      %v1416 = vsel %vm1415, %v1383, %v775
      %v1417 = vsel %vm1415, %v1384, %v777
      %v1418 = vsel %vm1415, %v1385, %v779
      %v1419 = vsel %vm1415, %v1386, %v781
      %v1420 = vsel %vm1415, %v1387, %v783
      %v1421 = vsel %vm1415, %v1388, %v785
      %v1422 = vsel %vm1415, %v1389, %v787
      %v1423 = vsel %vm1415, %v1390, %v789
      %v1424 = vsel %vm1415, %v1391, %v791
      %v1425 = vsel %vm1415, %v1392, %v793
      %v1426 = vsel %vm1415, %v1393, %v795
      %v1427 = vsel %vm1415, %v1394, %v797
      %v1428 = vsel %vm1415, %v1395, %v799
      %v1429 = vsel %vm1415, %v1396, %v801
      %v1430 = vsel %vm1415, %v1397, %v803
      %v1431 = vsel %vm1415, %v1398, %v805
      %v1432 = vsel %vm1415, %v1399, %v807
      %v1433 = vsel %vm1415, %v1400, %v809
      %v1434 = vsel %vm1415, %v1401, %v811
      %v1435 = vsel %vm1415, %v1402, %v813
      %v1436 = vsel %vm1415, %v1403, %v815
      %v1437 = vsel %vm1415, %v1404, %v817
      %v1438 = vsel %vm1415, %v1405, %v819
      %v1439 = vsel %vm1415, %v1406, %v821
      %v1440 = vsel %vm1415, %v1407, %v823
      %v1441 = vsel %vm1415, %v1408, %v825
      %v1442 = vsel %vm1415, %v1409, %v827
      %v1443 = vsel %vm1415, %v1410, %v829
      %v1444 = vsel %vm1415, %v1411, %v831
      %v1445 = vsel %vm1415, %v1412, %v833
      %v1446 = vsel %vm1415, %v1413, %v835
      %v1447 = vsel %vm1415, %v1414, %v837
      %vm1448 = vcmask 130048
      %v1449 = vsel %vm1448, %v1416, %v871
      %v1450 = vsel %vm1448, %v1417, %v873
      %v1451 = vsel %vm1448, %v1418, %v875
      %v1452 = vsel %vm1448, %v1419, %v877
      %v1453 = vsel %vm1448, %v1420, %v879
      %v1454 = vsel %vm1448, %v1421, %v881
      %v1455 = vsel %vm1448, %v1422, %v883
      %v1456 = vsel %vm1448, %v1423, %v885
      %v1457 = vsel %vm1448, %v1424, %v887
      %v1458 = vsel %vm1448, %v1425, %v889
      %v1459 = vsel %vm1448, %v1426, %v891
      %v1460 = vsel %vm1448, %v1427, %v893
      %v1461 = vsel %vm1448, %v1428, %v895
      %v1462 = vsel %vm1448, %v1429, %v897
      %v1463 = vsel %vm1448, %v1430, %v899
      %v1464 = vsel %vm1448, %v1431, %v901
      %v1465 = vsel %vm1448, %v1432, %v903
      %v1466 = vsel %vm1448, %v1433, %v905
      %v1467 = vsel %vm1448, %v1434, %v907
      %v1468 = vsel %vm1448, %v1435, %v909
      %v1469 = vsel %vm1448, %v1436, %v911
      %v1470 = vsel %vm1448, %v1437, %v913
      %v1471 = vsel %vm1448, %v1438, %v915
      %v1472 = vsel %vm1448, %v1439, %v917
      %v1473 = vsel %vm1448, %v1440, %v919
      %v1474 = vsel %vm1448, %v1441, %v921
      %v1475 = vsel %vm1448, %v1442, %v923
      %v1476 = vsel %vm1448, %v1443, %v925
      %v1477 = vsel %vm1448, %v1444, %v927
      %v1478 = vsel %vm1448, %v1445, %v929
      %v1479 = vsel %vm1448, %v1446, %v931
      %v1480 = vsel %vm1448, %v1447, %v933
      %vm1481 = vcmask 162816
      %v1482 = vsel %vm1481, %v1449, %v967
      %v1483 = vsel %vm1481, %v1450, %v969
      %v1484 = vsel %vm1481, %v1451, %v971
      %v1485 = vsel %vm1481, %v1452, %v973
      %v1486 = vsel %vm1481, %v1453, %v975
      %v1487 = vsel %vm1481, %v1454, %v977
      %v1488 = vsel %vm1481, %v1455, %v979
      %v1489 = vsel %vm1481, %v1456, %v981
      %v1490 = vsel %vm1481, %v1457, %v983
      %v1491 = vsel %vm1481, %v1458, %v985
      %v1492 = vsel %vm1481, %v1459, %v987
      %v1493 = vsel %vm1481, %v1460, %v989
      %v1494 = vsel %vm1481, %v1461, %v991
      %v1495 = vsel %vm1481, %v1462, %v993
      %v1496 = vsel %vm1481, %v1463, %v995
      %v1497 = vsel %vm1481, %v1464, %v997
      %v1498 = vsel %vm1481, %v1465, %v999
      %v1499 = vsel %vm1481, %v1466, %v1001
      %v1500 = vsel %vm1481, %v1467, %v1003
      %v1501 = vsel %vm1481, %v1468, %v1005
      %v1502 = vsel %vm1481, %v1469, %v1007
      %v1503 = vsel %vm1481, %v1470, %v1009
      %v1504 = vsel %vm1481, %v1471, %v1011
      %v1505 = vsel %vm1481, %v1472, %v1013
      %v1506 = vsel %vm1481, %v1473, %v1015
      %v1507 = vsel %vm1481, %v1474, %v1017
      %v1508 = vsel %vm1481, %v1475, %v1019
      %v1509 = vsel %vm1481, %v1476, %v1021
      %v1510 = vsel %vm1481, %v1477, %v1023
      %v1511 = vsel %vm1481, %v1478, %v1025
      %v1512 = vsel %vm1481, %v1479, %v1027
      %v1513 = vsel %vm1481, %v1480, %v1029
      %vm1514 = vcmask 195584
      %v1515 = vsel %vm1514, %v1482, %v1063
      %v1516 = vsel %vm1514, %v1483, %v1065
      %v1517 = vsel %vm1514, %v1484, %v1067
      %v1518 = vsel %vm1514, %v1485, %v1069
      %v1519 = vsel %vm1514, %v1486, %v1071
      %v1520 = vsel %vm1514, %v1487, %v1073
      %v1521 = vsel %vm1514, %v1488, %v1075
      %v1522 = vsel %vm1514, %v1489, %v1077
      %v1523 = vsel %vm1514, %v1490, %v1079
      %v1524 = vsel %vm1514, %v1491, %v1081
      %v1525 = vsel %vm1514, %v1492, %v1083
      %v1526 = vsel %vm1514, %v1493, %v1085
      %v1527 = vsel %vm1514, %v1494, %v1087
      %v1528 = vsel %vm1514, %v1495, %v1089
      %v1529 = vsel %vm1514, %v1496, %v1091
      %v1530 = vsel %vm1514, %v1497, %v1093
      %v1531 = vsel %vm1514, %v1498, %v1095
      %v1532 = vsel %vm1514, %v1499, %v1097
      %v1533 = vsel %vm1514, %v1500, %v1099
      %v1534 = vsel %vm1514, %v1501, %v1101
      %v1535 = vsel %vm1514, %v1502, %v1103
      %v1536 = vsel %vm1514, %v1503, %v1105
      %v1537 = vsel %vm1514, %v1504, %v1107
      %v1538 = vsel %vm1514, %v1505, %v1109
      %v1539 = vsel %vm1514, %v1506, %v1111
      %v1540 = vsel %vm1514, %v1507, %v1113
      %v1541 = vsel %vm1514, %v1508, %v1115
      %v1542 = vsel %vm1514, %v1509, %v1117
      %v1543 = vsel %vm1514, %v1510, %v1119
      %v1544 = vsel %vm1514, %v1511, %v1121
      %v1545 = vsel %vm1514, %v1512, %v1123
      %v1546 = vsel %vm1514, %v1513, %v1125
      %vm1547 = vcmask 228352
      %v1548 = vsel %vm1547, %v1515, %v1159
      %v1549 = vsel %vm1547, %v1516, %v1161
      %v1550 = vsel %vm1547, %v1517, %v1163
      %v1551 = vsel %vm1547, %v1518, %v1165
      %v1552 = vsel %vm1547, %v1519, %v1167
      %v1553 = vsel %vm1547, %v1520, %v1169
      %v1554 = vsel %vm1547, %v1521, %v1171
      %v1555 = vsel %vm1547, %v1522, %v1173
      %v1556 = vsel %vm1547, %v1523, %v1175
      %v1557 = vsel %vm1547, %v1524, %v1177
      %v1558 = vsel %vm1547, %v1525, %v1179
      %v1559 = vsel %vm1547, %v1526, %v1181
      %v1560 = vsel %vm1547, %v1527, %v1183
      %v1561 = vsel %vm1547, %v1528, %v1185
      %v1562 = vsel %vm1547, %v1529, %v1187
      %v1563 = vsel %vm1547, %v1530, %v1189
      %v1564 = vsel %vm1547, %v1531, %v1191
      %v1565 = vsel %vm1547, %v1532, %v1193
      %v1566 = vsel %vm1547, %v1533, %v1195
      %v1567 = vsel %vm1547, %v1534, %v1197
      %v1568 = vsel %vm1547, %v1535, %v1199
      %v1569 = vsel %vm1547, %v1536, %v1201
      %v1570 = vsel %vm1547, %v1537, %v1203
      %v1571 = vsel %vm1547, %v1538, %v1205
      %v1572 = vsel %vm1547, %v1539, %v1207
      %v1573 = vsel %vm1547, %v1540, %v1209
      %v1574 = vsel %vm1547, %v1541, %v1211
      %v1575 = vsel %vm1547, %v1542, %v1213
      %v1576 = vsel %vm1547, %v1543, %v1215
      %v1577 = vsel %vm1547, %v1544, %v1217
      %v1578 = vsel %vm1547, %v1545, %v1219
      %v1579 = vsel %vm1547, %v1546, %v1221
      %vm1580 = vcmask 261120
      %v1581 = vsel %vm1580, %v1548, %v1255
      %v1582 = vsel %vm1580, %v1549, %v1257
      %v1583 = vsel %vm1580, %v1550, %v1259
      %v1584 = vsel %vm1580, %v1551, %v1261
      %v1585 = vsel %vm1580, %v1552, %v1263
      %v1586 = vsel %vm1580, %v1553, %v1265
      %v1587 = vsel %vm1580, %v1554, %v1267
      %v1588 = vsel %vm1580, %v1555, %v1269
      %v1589 = vsel %vm1580, %v1556, %v1271
      %v1590 = vsel %vm1580, %v1557, %v1273
      %v1591 = vsel %vm1580, %v1558, %v1275
      %v1592 = vsel %vm1580, %v1559, %v1277
      %v1593 = vsel %vm1580, %v1560, %v1279
      %v1594 = vsel %vm1580, %v1561, %v1281
      %v1595 = vsel %vm1580, %v1562, %v1283
      %v1596 = vsel %vm1580, %v1563, %v1285
      %v1597 = vsel %vm1580, %v1564, %v1287
      %v1598 = vsel %vm1580, %v1565, %v1289
      %v1599 = vsel %vm1580, %v1566, %v1291
      %v1600 = vsel %vm1580, %v1567, %v1293
      %v1601 = vsel %vm1580, %v1568, %v1295
      %v1602 = vsel %vm1580, %v1569, %v1297
      %v1603 = vsel %vm1580, %v1570, %v1299
      %v1604 = vsel %vm1580, %v1571, %v1301
      %v1605 = vsel %vm1580, %v1572, %v1303
      %v1606 = vsel %vm1580, %v1573, %v1305
      %v1607 = vsel %vm1580, %v1574, %v1307
      %v1608 = vsel %vm1580, %v1575, %v1309
      %v1609 = vsel %vm1580, %v1576, %v1311
      %v1610 = vsel %vm1580, %v1577, %v1313
      %v1611 = vsel %vm1580, %v1578, %v1315
      %v1612 = vsel %vm1580, %v1579, %v1317
      %v1613 = vld [vmem:[%s1] sm:$0xff]
      %v1614 = vld [vmem:[%s1 + $0x8] sm:$0xff]
      %v1615 = vld [vmem:[%s1 + $0x10] sm:$0xff]
      %v1616 = vld [vmem:[%s1 + $0x18] sm:$0xff]
      %v1617 = vld [vmem:[%s1 + $0x20] sm:$0xf]
      %vm1618 = vcmask 293888
      %v1620 = vsel %vm1618, %v1581, 0
      %v1623 = vsel %vm1618, %v1582, 0
      %v1626 = vsel %vm1618, %v1583, 0
      %v1629 = vsel %vm1618, %v1584, 0
      %v1632 = vsel %vm1618, %v1585, 0
      %v1635 = vsel %vm1618, %v1586, 0
      %v1638 = vsel %vm1618, %v1587, 0
      %v1641 = vsel %vm1618, %v1588, 0
      %v1644 = vsel %vm1618, %v1589, 0
      %v1647 = vsel %vm1618, %v1590, 0
      %v1650 = vsel %vm1618, %v1591, 0
      %v1653 = vsel %vm1618, %v1592, 0
      %v1656 = vsel %vm1618, %v1593, 0
      %v1659 = vsel %vm1618, %v1594, 0
      %v1662 = vsel %vm1618, %v1595, 0
      %v1665 = vsel %vm1618, %v1596, 0
      %v1668 = vsel %vm1618, %v1597, 0
      %v1671 = vsel %vm1618, %v1598, 0
      %v1674 = vsel %vm1618, %v1599, 0
      %v1677 = vsel %vm1618, %v1600, 0
      %v1680 = vsel %vm1618, %v1601, 0
      %v1683 = vsel %vm1618, %v1602, 0
      %v1686 = vsel %vm1618, %v1603, 0
      %v1689 = vsel %vm1618, %v1604, 0
      %v1692 = vsel %vm1618, %v1605, 0
      %v1695 = vsel %vm1618, %v1606, 0
      %v1698 = vsel %vm1618, %v1607, 0
      %v1701 = vsel %vm1618, %v1608, 0
      %v1704 = vsel %vm1618, %v1609, 0
      %v1707 = vsel %vm1618, %v1610, 0
      %v1710 = vsel %vm1618, %v1611, 0
      %v1713 = vsel %vm1618, %v1612, 0
      %vm1715 = vcmask 1043456
      %v1717 = vsel %vm1715, %v1617, 0
      %1719 = vmatpush.msra.mxu0 0.0
      %1720 = vmatpush.msra.mxu0 0.0
      %1721 = vmatpush.msra.mxu0 0.0
      %1722 = vmatpush.msra.mxu0 0.0
      %1723 = vmatpush.msra.mxu0 0.0
      %1724 = vmatpush.msra.mxu0 0.0
      %1725 = vmatpush.msra.mxu0 0.0
      %1726 = vmatpush.msra.mxu0 0.0
      %1727 = vmatpush.msra.mxu0 0.0
      %1728 = vmatpush.msra.mxu0 0.0
      %1729 = vmatpush.msra.mxu0 0.0
      %1730 = vmatpush.msra.mxu0 %v1717
      %1731 = vmatpush.msra.mxu0 %v1616
      %1732 = vmatpush.msra.mxu0 %v1615
      %1733 = vmatpush.msra.mxu0 %v1614
      %1734 = vmatpush.msra.mxu0 %v1613
      %1735 = vmatmul.f32.gmra.mxu0 %v1620
      %v1736 = vpop.f32.mrf.mxu0
      %v1737 = vadd.f32 0.0, %v1736
      %1738 = vmatmul.f32.gmra.mxu0 %v1623
      %v1739 = vpop.f32.mrf.mxu0
      %v1740 = vadd.f32 0.0, %v1739
      %1741 = vmatmul.f32.gmra.mxu0 %v1626
      %v1742 = vpop.f32.mrf.mxu0
      %v1743 = vadd.f32 0.0, %v1742
      %1744 = vmatmul.f32.gmra.mxu0 %v1629
      %v1745 = vpop.f32.mrf.mxu0
      %v1746 = vadd.f32 0.0, %v1745
      %1747 = vmatmul.f32.gmra.mxu0 %v1632
      %v1748 = vpop.f32.mrf.mxu0
      %v1749 = vadd.f32 0.0, %v1748
      %1750 = vmatmul.f32.gmra.mxu0 %v1635
      %v1751 = vpop.f32.mrf.mxu0
      %v1752 = vadd.f32 0.0, %v1751
      %1753 = vmatmul.f32.gmra.mxu0 %v1638
      %v1754 = vpop.f32.mrf.mxu0
      %v1755 = vadd.f32 0.0, %v1754
      %1756 = vmatmul.f32.gmra.mxu0 %v1641
      %v1757 = vpop.f32.mrf.mxu0
      %v1758 = vadd.f32 0.0, %v1757
      %1759 = vmatmul.f32.gmra.mxu0 %v1644
      %v1760 = vpop.f32.mrf.mxu0
      %v1761 = vadd.f32 0.0, %v1760
      %1762 = vmatmul.f32.gmra.mxu0 %v1647
      %v1763 = vpop.f32.mrf.mxu0
      %v1764 = vadd.f32 0.0, %v1763
      %1765 = vmatmul.f32.gmra.mxu0 %v1650
      %v1766 = vpop.f32.mrf.mxu0
      %v1767 = vadd.f32 0.0, %v1766
      %1768 = vmatmul.f32.gmra.mxu0 %v1653
      %v1769 = vpop.f32.mrf.mxu0
      %v1770 = vadd.f32 0.0, %v1769
      %1771 = vmatmul.f32.gmra.mxu0 %v1656
      %v1772 = vpop.f32.mrf.mxu0
      %v1773 = vadd.f32 0.0, %v1772
      %1774 = vmatmul.f32.gmra.mxu0 %v1659
      %v1775 = vpop.f32.mrf.mxu0
      %v1776 = vadd.f32 0.0, %v1775
      %1777 = vmatmul.f32.gmra.mxu0 %v1662
      %v1778 = vpop.f32.mrf.mxu0
      %v1779 = vadd.f32 0.0, %v1778
      %1780 = vmatmul.f32.gmra.mxu0 %v1665
      %v1781 = vpop.f32.mrf.mxu0
      %v1782 = vadd.f32 0.0, %v1781
      %1783 = vmatmul.f32.gmra.mxu0 %v1668
      %v1784 = vpop.f32.mrf.mxu0
      %v1785 = vadd.f32 0.0, %v1784
      %1786 = vmatmul.f32.gmra.mxu0 %v1671
      %v1787 = vpop.f32.mrf.mxu0
      %v1788 = vadd.f32 0.0, %v1787
      %1789 = vmatmul.f32.gmra.mxu0 %v1674
      %v1790 = vpop.f32.mrf.mxu0
      %v1791 = vadd.f32 0.0, %v1790
      %1792 = vmatmul.f32.gmra.mxu0 %v1677
      %v1793 = vpop.f32.mrf.mxu0
      %v1794 = vadd.f32 0.0, %v1793
      %1795 = vmatmul.f32.gmra.mxu0 %v1680
      %v1796 = vpop.f32.mrf.mxu0
      %v1797 = vadd.f32 0.0, %v1796
      %1798 = vmatmul.f32.gmra.mxu0 %v1683
      %v1799 = vpop.f32.mrf.mxu0
      %v1800 = vadd.f32 0.0, %v1799
      %1801 = vmatmul.f32.gmra.mxu0 %v1686
      %v1802 = vpop.f32.mrf.mxu0
      %v1803 = vadd.f32 0.0, %v1802
      %1804 = vmatmul.f32.gmra.mxu0 %v1689
      %v1805 = vpop.f32.mrf.mxu0
      %v1806 = vadd.f32 0.0, %v1805
      %1807 = vmatmul.f32.gmra.mxu0 %v1692
      %v1808 = vpop.f32.mrf.mxu0
      %v1809 = vadd.f32 0.0, %v1808
      %1810 = vmatmul.f32.gmra.mxu0 %v1695
      %v1811 = vpop.f32.mrf.mxu0
      %v1812 = vadd.f32 0.0, %v1811
      %1813 = vmatmul.f32.gmra.mxu0 %v1698
      %v1814 = vpop.f32.mrf.mxu0
      %v1815 = vadd.f32 0.0, %v1814
      %1816 = vmatmul.f32.gmra.mxu0 %v1701
      %v1817 = vpop.f32.mrf.mxu0
      %v1818 = vadd.f32 0.0, %v1817
      %1819 = vmatmul.f32.gmra.mxu0 %v1704
      %v1820 = vpop.f32.mrf.mxu0
      %v1821 = vadd.f32 0.0, %v1820
      %1822 = vmatmul.f32.gmra.mxu0 %v1707
      %v1823 = vpop.f32.mrf.mxu0
      %v1824 = vadd.f32 0.0, %v1823
      %1825 = vmatmul.f32.gmra.mxu0 %v1710
      %v1826 = vpop.f32.mrf.mxu0
      %v1827 = vadd.f32 0.0, %v1826
      %1828 = vmatmul.f32.gmra.mxu0 %v1713
      %v1829 = vpop.f32.mrf.mxu0
      %v1830 = vadd.f32 0.0, %v1829
      %1831 = vdwg.mxu0
      %v1832 = vmax.f32 %v1737, 0.0
      %v1833 = vmax.f32 %v1740, 0.0
      %v1834 = vmax.f32 %v1743, 0.0
      %v1835 = vmax.f32 %v1746, 0.0
      %v1836 = vmax.f32 %v1749, 0.0
      %v1837 = vmax.f32 %v1752, 0.0
      %v1838 = vmax.f32 %v1755, 0.0
      %v1839 = vmax.f32 %v1758, 0.0
      %v1840 = vmax.f32 %v1761, 0.0
      %v1841 = vmax.f32 %v1764, 0.0
      %v1842 = vmax.f32 %v1767, 0.0
      %v1843 = vmax.f32 %v1770, 0.0
      %v1844 = vmax.f32 %v1773, 0.0
      %v1845 = vmax.f32 %v1776, 0.0
      %v1846 = vmax.f32 %v1779, 0.0
      %v1847 = vmax.f32 %v1782, 0.0
      %v1848 = vmax.f32 %v1785, 0.0
      %v1849 = vmax.f32 %v1788, 0.0
      %v1850 = vmax.f32 %v1791, 0.0
      %v1851 = vmax.f32 %v1794, 0.0
      %v1852 = vmax.f32 %v1797, 0.0
      %v1853 = vmax.f32 %v1800, 0.0
      %v1854 = vmax.f32 %v1803, 0.0
      %v1855 = vmax.f32 %v1806, 0.0
      %v1856 = vmax.f32 %v1809, 0.0
      %v1857 = vmax.f32 %v1812, 0.0
      %v1858 = vmax.f32 %v1815, 0.0
      %v1859 = vmax.f32 %v1818, 0.0
      %v1860 = vmax.f32 %v1821, 0.0
      %v1861 = vmax.f32 %v1824, 0.0
      %v1862 = vmax.f32 %v1827, 0.0
      %v1863 = vmax.f32 %v1830, 0.0
      %v1864 = vld [vmem:[%s2] sm:$0xf]
      %v1866 = vsel %vm203, %v1832, 0
      %v1869 = vsel %vm203, %v1833, 0
      %v1872 = vsel %vm203, %v1834, 0
      %v1875 = vsel %vm203, %v1835, 0
      %v1878 = vsel %vm203, %v1836, 0
      %v1881 = vsel %vm203, %v1837, 0
      %v1884 = vsel %vm203, %v1838, 0
      %v1887 = vsel %vm203, %v1839, 0
      %v1890 = vsel %vm203, %v1840, 0
      %v1893 = vsel %vm203, %v1841, 0
      %v1896 = vsel %vm203, %v1842, 0
      %v1899 = vsel %vm203, %v1843, 0
      %v1902 = vsel %vm203, %v1844, 0
      %v1905 = vsel %vm203, %v1845, 0
      %v1908 = vsel %vm203, %v1846, 0
      %v1911 = vsel %vm203, %v1847, 0
      %v1914 = vsel %vm203, %v1848, 0
      %v1917 = vsel %vm203, %v1849, 0
      %v1920 = vsel %vm203, %v1850, 0
      %v1923 = vsel %vm203, %v1851, 0
      %v1926 = vsel %vm203, %v1852, 0
      %v1929 = vsel %vm203, %v1853, 0
      %v1932 = vsel %vm203, %v1854, 0
      %v1935 = vsel %vm203, %v1855, 0
      %v1938 = vsel %vm203, %v1856, 0
      %v1941 = vsel %vm203, %v1857, 0
      %v1944 = vsel %vm203, %v1858, 0
      %v1947 = vsel %vm203, %v1859, 0
      %v1950 = vsel %vm203, %v1860, 0
      %v1953 = vsel %vm203, %v1861, 0
      %v1956 = vsel %vm203, %v1862, 0
      %v1959 = vsel %vm203, %v1863, 0
      %v1962 = vsel %vm1715, %v1864, 0
      %1964 = vmatpush.msra.mxu0 0.0
      %1965 = vmatpush.msra.mxu0 0.0
      %1966 = vmatpush.msra.mxu0 0.0
      %1967 = vmatpush.msra.mxu0 0.0
      %1968 = vmatpush.msra.mxu0 0.0
      %1969 = vmatpush.msra.mxu0 0.0
      %1970 = vmatpush.msra.mxu0 0.0
      %1971 = vmatpush.msra.mxu0 0.0
      %1972 = vmatpush.msra.mxu0 0.0
      %1973 = vmatpush.msra.mxu0 0.0
      %1974 = vmatpush.msra.mxu0 0.0
      %1975 = vmatpush.msra.mxu0 0.0
      %1976 = vmatpush.msra.mxu0 0.0
      %1977 = vmatpush.msra.mxu0 0.0
      %1978 = vmatpush.msra.mxu0 0.0
      %1979 = vmatpush.msra.mxu0 %v1962
      %1980 = vmatmul.f32.gmra.mxu0 %v1866
      %v1981 = vpop.f32.mrf.mxu0
      %v1982 = vadd.f32 0.0, %v1981
      %1983 = vmatmul.f32.gmra.mxu0 %v1869
      %v1984 = vpop.f32.mrf.mxu0
      %v1985 = vadd.f32 0.0, %v1984
      %1986 = vmatmul.f32.gmra.mxu0 %v1872
      %v1987 = vpop.f32.mrf.mxu0
      %v1988 = vadd.f32 0.0, %v1987
      %1989 = vmatmul.f32.gmra.mxu0 %v1875
      %v1990 = vpop.f32.mrf.mxu0
      %v1991 = vadd.f32 0.0, %v1990
      %1992 = vmatmul.f32.gmra.mxu0 %v1878
      %v1993 = vpop.f32.mrf.mxu0
      %v1994 = vadd.f32 0.0, %v1993
      %1995 = vmatmul.f32.gmra.mxu0 %v1881
      %v1996 = vpop.f32.mrf.mxu0
      %v1997 = vadd.f32 0.0, %v1996
      %1998 = vmatmul.f32.gmra.mxu0 %v1884
      %v1999 = vpop.f32.mrf.mxu0
      %v2000 = vadd.f32 0.0, %v1999
      %2001 = vmatmul.f32.gmra.mxu0 %v1887
      %v2002 = vpop.f32.mrf.mxu0
      %v2003 = vadd.f32 0.0, %v2002
      %2004 = vmatmul.f32.gmra.mxu0 %v1890
      %v2005 = vpop.f32.mrf.mxu0
      %v2006 = vadd.f32 0.0, %v2005
      %2007 = vmatmul.f32.gmra.mxu0 %v1893
      %v2008 = vpop.f32.mrf.mxu0
      %v2009 = vadd.f32 0.0, %v2008
      %2010 = vmatmul.f32.gmra.mxu0 %v1896
      %v2011 = vpop.f32.mrf.mxu0
      %v2012 = vadd.f32 0.0, %v2011
      %2013 = vmatmul.f32.gmra.mxu0 %v1899
      %v2014 = vpop.f32.mrf.mxu0
      %v2015 = vadd.f32 0.0, %v2014
      %2016 = vmatmul.f32.gmra.mxu0 %v1902
      %v2017 = vpop.f32.mrf.mxu0
      %v2018 = vadd.f32 0.0, %v2017
      %2019 = vmatmul.f32.gmra.mxu0 %v1905
      %v2020 = vpop.f32.mrf.mxu0
      %v2021 = vadd.f32 0.0, %v2020
      %2022 = vmatmul.f32.gmra.mxu0 %v1908
      %v2023 = vpop.f32.mrf.mxu0
      %v2024 = vadd.f32 0.0, %v2023
      %2025 = vmatmul.f32.gmra.mxu0 %v1911
      %v2026 = vpop.f32.mrf.mxu0
      %v2027 = vadd.f32 0.0, %v2026
      %2028 = vmatmul.f32.gmra.mxu0 %v1914
      %v2029 = vpop.f32.mrf.mxu0
      %v2030 = vadd.f32 0.0, %v2029
      %2031 = vmatmul.f32.gmra.mxu0 %v1917
      %v2032 = vpop.f32.mrf.mxu0
      %v2033 = vadd.f32 0.0, %v2032
      %2034 = vmatmul.f32.gmra.mxu0 %v1920
      %v2035 = vpop.f32.mrf.mxu0
      %v2036 = vadd.f32 0.0, %v2035
      %2037 = vmatmul.f32.gmra.mxu0 %v1923
      %v2038 = vpop.f32.mrf.mxu0
      %v2039 = vadd.f32 0.0, %v2038
      %2040 = vmatmul.f32.gmra.mxu0 %v1926
      %v2041 = vpop.f32.mrf.mxu0
      %v2042 = vadd.f32 0.0, %v2041
      %2043 = vmatmul.f32.gmra.mxu0 %v1929
      %v2044 = vpop.f32.mrf.mxu0
      %v2045 = vadd.f32 0.0, %v2044
      %2046 = vmatmul.f32.gmra.mxu0 %v1932
      %v2047 = vpop.f32.mrf.mxu0
      %v2048 = vadd.f32 0.0, %v2047
      %2049 = vmatmul.f32.gmra.mxu0 %v1935
      %v2050 = vpop.f32.mrf.mxu0
      %v2051 = vadd.f32 0.0, %v2050
      %2052 = vmatmul.f32.gmra.mxu0 %v1938
      %v2053 = vpop.f32.mrf.mxu0
      %v2054 = vadd.f32 0.0, %v2053
      %2055 = vmatmul.f32.gmra.mxu0 %v1941
      %v2056 = vpop.f32.mrf.mxu0
      %v2057 = vadd.f32 0.0, %v2056
      %2058 = vmatmul.f32.gmra.mxu0 %v1944
      %v2059 = vpop.f32.mrf.mxu0
      %v2060 = vadd.f32 0.0, %v2059
      %2061 = vmatmul.f32.gmra.mxu0 %v1947
      %v2062 = vpop.f32.mrf.mxu0
      %v2063 = vadd.f32 0.0, %v2062
      %2064 = vmatmul.f32.gmra.mxu0 %v1950
      %v2065 = vpop.f32.mrf.mxu0
      %v2066 = vadd.f32 0.0, %v2065
      %2067 = vmatmul.f32.gmra.mxu0 %v1953
      %v2068 = vpop.f32.mrf.mxu0
      %v2069 = vadd.f32 0.0, %v2068
      %2070 = vmatmul.f32.gmra.mxu0 %v1956
      %v2071 = vpop.f32.mrf.mxu0
      %v2072 = vadd.f32 0.0, %v2071
      %2073 = vmatmul.f32.gmra.mxu0 %v1959
      %v2074 = vpop.f32.mrf.mxu0
      %v2075 = vadd.f32 0.0, %v2074
      %2076 = vdwg.mxu0
      %v2077 = vadd.f32 %v171, %v1982
      %v2078 = vadd.f32 %v172, %v1985
      %v2079 = vadd.f32 %v173, %v1988
      %v2080 = vadd.f32 %v174, %v1991
      %v2081 = vadd.f32 %v175, %v1994
      %v2082 = vadd.f32 %v176, %v1997
      %v2083 = vadd.f32 %v177, %v2000
      %v2084 = vadd.f32 %v178, %v2003
      %v2085 = vadd.f32 %v179, %v2006
      %v2086 = vadd.f32 %v180, %v2009
      %v2087 = vadd.f32 %v181, %v2012
      %v2088 = vadd.f32 %v182, %v2015
      %v2089 = vadd.f32 %v183, %v2018
      %v2090 = vadd.f32 %v184, %v2021
      %v2091 = vadd.f32 %v185, %v2024
      %v2092 = vadd.f32 %v186, %v2027
      %v2093 = vadd.f32 %v187, %v2030
      %v2094 = vadd.f32 %v188, %v2033
      %v2095 = vadd.f32 %v189, %v2036
      %v2096 = vadd.f32 %v190, %v2039
      %v2097 = vadd.f32 %v191, %v2042
      %v2098 = vadd.f32 %v192, %v2045
      %v2099 = vadd.f32 %v193, %v2048
      %v2100 = vadd.f32 %v194, %v2051
      %v2101 = vadd.f32 %v195, %v2054
      %v2102 = vadd.f32 %v196, %v2057
      %v2103 = vadd.f32 %v197, %v2060
      %v2104 = vadd.f32 %v198, %v2063
      %v2105 = vadd.f32 %v199, %v2066
      %v2106 = vadd.f32 %v200, %v2069
      %v2107 = vadd.f32 %v201, %v2072
      %v2108 = vadd.f32 %v202, %v2075
      %2109 = vst.msk [vmem:[%s170] sm:$0xff] %vm203, %v2077
      %2110 = vst.msk [vmem:[%s170 + $0x8] sm:$0xff] %vm203, %v2078
      %2111 = vst.msk [vmem:[%s170 + $0x10] sm:$0xff] %vm203, %v2079
      %2112 = vst.msk [vmem:[%s170 + $0x18] sm:$0xff] %vm203, %v2080
      %2113 = vst.msk [vmem:[%s170 + $0x20] sm:$0xff] %vm203, %v2081
      %2114 = vst.msk [vmem:[%s170 + $0x28] sm:$0xff] %vm203, %v2082
      %2115 = vst.msk [vmem:[%s170 + $0x30] sm:$0xff] %vm203, %v2083
      %2116 = vst.msk [vmem:[%s170 + $0x38] sm:$0xff] %vm203, %v2084
      %2117 = vst.msk [vmem:[%s170 + $0x40] sm:$0xff] %vm203, %v2085
      %2118 = vst.msk [vmem:[%s170 + $0x48] sm:$0xff] %vm203, %v2086
      %2119 = vst.msk [vmem:[%s170 + $0x50] sm:$0xff] %vm203, %v2087
      %2120 = vst.msk [vmem:[%s170 + $0x58] sm:$0xff] %vm203, %v2088
      %2121 = vst.msk [vmem:[%s170 + $0x60] sm:$0xff] %vm203, %v2089
      %2122 = vst.msk [vmem:[%s170 + $0x68] sm:$0xff] %vm203, %v2090
      %2123 = vst.msk [vmem:[%s170 + $0x70] sm:$0xff] %vm203, %v2091
      %2124 = vst.msk [vmem:[%s170 + $0x78] sm:$0xff] %vm203, %v2092
      %2125 = vst.msk [vmem:[%s170 + $0x80] sm:$0xff] %vm203, %v2093
      %2126 = vst.msk [vmem:[%s170 + $0x88] sm:$0xff] %vm203, %v2094
      %2127 = vst.msk [vmem:[%s170 + $0x90] sm:$0xff] %vm203, %v2095
      %2128 = vst.msk [vmem:[%s170 + $0x98] sm:$0xff] %vm203, %v2096
      %2129 = vst.msk [vmem:[%s170 + $0xa0] sm:$0xff] %vm203, %v2097
      %2130 = vst.msk [vmem:[%s170 + $0xa8] sm:$0xff] %vm203, %v2098
      %2131 = vst.msk [vmem:[%s170 + $0xb0] sm:$0xff] %vm203, %v2099
      %2132 = vst.msk [vmem:[%s170 + $0xb8] sm:$0xff] %vm203, %v2100
      %2133 = vst.msk [vmem:[%s170 + $0xc0] sm:$0xff] %vm203, %v2101
      %2134 = vst.msk [vmem:[%s170 + $0xc8] sm:$0xff] %vm203, %v2102
      %2135 = vst.msk [vmem:[%s170 + $0xd0] sm:$0xff] %vm203, %v2103
      %2136 = vst.msk [vmem:[%s170 + $0xd8] sm:$0xff] %vm203, %v2104
      %2137 = vst.msk [vmem:[%s170 + $0xe0] sm:$0xff] %vm203, %v2105
      %2138 = vst.msk [vmem:[%s170 + $0xe8] sm:$0xff] %vm203, %v2106
      %2139 = vst.msk [vmem:[%s170 + $0xf0] sm:$0xff] %vm203, %v2107
      %2140 = vst.msk [vmem:[%s170 + $0xf8] sm:$0xff] %vm203, %v2108
      %p2141 = scmp.lt.s32.totalorder %s14, 1
      %s2142 = scalar_select %p2141, %s14, 1
      %s2143 = smul.addr %s2142, 32
      %s2144 = smul.addr %s2143, 8
      %s2145 = scalar_lea.vmem %s3, %s2144
      // Predicated region
      $region33: #{tpu_custom_call.1} parent=31 // pred_check
        %p2146 = pneg %p100
      $region34: #{tpu_custom_call.1} parent=31 // pred_check_branch
        %2148 = sbr.rel (%p2146) target = $region36
      $region35: #{tpu_custom_call.1} parent=31 // pred_region
        _
      $region36: #{tpu_custom_call.1} parent=31 // pred_fallthru
        _
    $region32: #{tpu_custom_call.1} parent=5 // pred_fallthru
      _
    %p2149 = scmp.le.s32.totalorder 2, %s9
    // Predicated region
    $region37: #{tpu_custom_call.1} parent=5 // pred_check
      %p2150 = pneg %p2149
    $region38: #{tpu_custom_call.1} parent=5 // pred_check_branch
      %2152 = sbr.rel (%p2150) target = $region40
    $region39: #{tpu_custom_call.1} parent=5 // pred_region
      %s2153 = ssub.s32 %s9, 2
      // Predicated region
      $region41: #{tpu_custom_call.1} parent=39 // pred_check
        %p2154 = pneg %p106
      $region42: #{tpu_custom_call.1} parent=39 // pred_check_branch
        %2156 = sbr.rel (%p2154) target = $region44
      $region43: #{tpu_custom_call.1} parent=39 // pred_region
        %p2157 = scmp.lt.s32.totalorder %s15, 1
        %s2158 = scalar_select %p2157, %s15, 1
        %s2159 = smul.addr %s2158, 32
        %s2160 = smul.addr %s2159, 8
        %s2161 = scalar_lea.vmem %s3, %s2160
      $region44: #{tpu_custom_call.1} parent=39 // pred_fallthru
        _
    $region40: #{tpu_custom_call.1} parent=5 // pred_fallthru
      _
  $region6: #{tpu_custom_call.1} parent=0 // loop_footer
    %s13 = sadd.s32 1, %s9
  $region7: #{tpu_custom_call.1} parent=0 // loop_footer_branch
    %8 = sbr.rel target = $region3
  $region8: #{tpu_custom_call.1} parent=0 // loop_exit
    _

</llo_original>
